<compile_context>
chip_gen: v7x
topology: tpu7x:2x2x1
jax: 0.10.0
libtpu: 0.0.40
codegen_flags: <defaults>
</compile_context>

<pallas_src>
import functools

import jax
import jax.numpy as jnp
from jax.experimental import pallas as pl
from jax.experimental.pallas import tpu as pltpu

C1, C2, C3 = 24, 12, 4      # channel sizes fixed by the Tail module


def _tail_kernel(x_ref, w1_ref, b1_ref, w2_ref, b2_ref, w3_ref, b3_ref,
                 cmask_ref, o_ref, y1_ref, y2_ref, xc_ref, *, H, Wp):
    """One batch element per grid step; all intermediates stay in VMEM.

    x_ref : (1, Cin, Lpad)  zero-padded image, spatial flattened row-major
    wN_ref: (CoutN, 9*CinN) bf16 weights, tap-major (dy, dx) columns
    bN_ref: (CoutN, 1)      f32 bias
    cmask : (1, M)          1.0 on valid width columns, 0.0 on the 2 pad cols
    o_ref : (1, 4, M)       lane-dense final output, M = H * Wp
    y1,y2 : (24|12, Lpad)   padded intermediate frames (VMEM scratch)
    xc    : (>=216, M)      shared im2col scratch
    """
    M = H * Wp
    OFF = Wp + 1                      # interior offset inside a padded frame
    cmask = cmask_ref[...]            # (1, M)

    def conv3x3(tap, cin, w_ref, b_ref):
        # scatter the 9 shifted (cin, M) windows -> (9*cin, M) im2col block
        for dy in range(3):
            for dx in range(3):
                t = dy * 3 + dx
                xc_ref[t * cin:(t + 1) * cin, :] = tap(dy * Wp + dx)
        rhs = xc_ref[0:9 * cin, :].astype(jnp.bfloat16)
        # single MXU matmul per conv: (cout, 9*cin) @ (9*cin, M), f32 accum
        acc = jnp.dot(w_ref[...], rhs, preferred_element_type=jnp.float32)
        return acc + b_ref[...]                          # (cout, M) f32

    # ---- conv1: c_lgan -> 24 (taps straight from the padded input block) ----
    cin0 = x_ref.shape[1]
    a1 = conv3x3(lambda p0: x_ref[0, :, p0:p0 + M], cin0, w1_ref, b1_ref)
    y1_ref[...] = jnp.zeros_like(y1_ref)                 # zero border ring
    y1_ref[:, OFF:OFF + M] = a1 * cmask                  # masked interior write

    # ---- conv2: 24 -> 12 -----------------------------------------------------
    a2 = conv3x3(lambda p0: y1_ref[:, p0:p0 + M], C1, w2_ref, b2_ref)
    y2_ref[...] = jnp.zeros_like(y2_ref)
    y2_ref[:, OFF:OFF + M] = a2 * cmask

    # ---- conv3: 12 -> 4 (padded-width cols are cropped by the wrapper) ------
    a3 = conv3x3(lambda p0: y2_ref[:, p0:p0 + M], C2, w3_ref, b3_ref)
    o_ref[0] = a3                                        # (4, M) lane-dense


def tail_forward(x_nchw, params):
    """Fused Tail forward: (N, c_lgan, H, W) f32 -> (N, 4, H, W) f32 (NCHW)."""
    (w1, b1), (w2, b2), (w3, b3) = params
    N, Cin, H, W = x_nchw.shape
    Hp, Wp = H + 2, W + 2
    M = H * Wp                       # compute over padded width, crop at the end
    Lpad = Hp * Wp + 8               # slack so every shifted tap window is in-bounds

    # zero-pad spatially, flatten rows (NCHW is already channels-first)
    xp = jnp.pad(x_nchw, ((0, 0), (0, 0), (1, 1), (1, 1))).reshape(N, Cin, Hp * Wp)
    xp = jnp.pad(xp, ((0, 0), (0, 0), (0, Lpad - Hp * Wp))).astype(jnp.float32)

    def prep_w(w):                   # (3,3,cin,cout) HWIO -> (cout, 9*cin) bf16
        cin, cout = w.shape[2], w.shape[3]
        return w.reshape(9 * cin, cout).T.astype(jnp.bfloat16)

    w1r, w2r, w3r = prep_w(w1), prep_w(w2), prep_w(w3)
    b1r = b1.reshape(C1, 1).astype(jnp.float32)
    b2r = b2.reshape(C2, 1).astype(jnp.float32)
    b3r = b3.reshape(C3, 1).astype(jnp.float32)

    # 1.0 for the W valid columns of each padded-width row, 0.0 for the 2 extras
    cmask = (jnp.arange(M, dtype=jnp.int32) % Wp < W).astype(jnp.float32)[None, :]

    xc_rows = max(9 * Cin, 9 * C1)
    kernel = functools.partial(_tail_kernel, H=H, Wp=Wp)

    flops = 2 * N * M * 9 * (Cin * C1 + C1 * C2 + C2 * C3)
    bytes_accessed = (xp.size + N * C3 * M) * 4 + 2 * (w1r.size + w2r.size + w3r.size)

    out = pl.pallas_call(
        kernel,
        out_shape=jax.ShapeDtypeStruct((N, C3, M), jnp.float32),
        grid=(N,),
        in_specs=[
            pl.BlockSpec((1, Cin, Lpad), lambda n: (n, 0, 0)),
            pl.BlockSpec((C1, 9 * Cin), lambda n: (0, 0)),
            pl.BlockSpec((C1, 1), lambda n: (0, 0)),
            pl.BlockSpec((C2, 9 * C1), lambda n: (0, 0)),
            pl.BlockSpec((C2, 1), lambda n: (0, 0)),
            pl.BlockSpec((C3, 9 * C2), lambda n: (0, 0)),
            pl.BlockSpec((C3, 1), lambda n: (0, 0)),
            pl.BlockSpec((1, M), lambda n: (0, 0)),
        ],
        out_specs=pl.BlockSpec((1, C3, M), lambda n: (n, 0, 0)),
        scratch_shapes=[
            pltpu.VMEM((C1, Lpad), jnp.float32),      # padded conv1 output frame
            pltpu.VMEM((C2, Lpad), jnp.float32),      # padded conv2 output frame
            pltpu.VMEM((xc_rows, M), jnp.float32),    # shared im2col block
        ],
        compiler_params=pltpu.CompilerParams(
            dimension_semantics=("parallel",)),        # v7x: batch across 2 TCs
        cost_estimate=pl.CostEstimate(
            flops=flops, transcendentals=0, bytes_accessed=bytes_accessed),
    )(xp, w1r, b1r, w2r, b2r, w3r, b3r, cmask)

    # crop the 2 padded-width columns; result is already NCHW
    return out.reshape(N, C3, H, Wp)[:, :, :, :W]


def init_tail_params(c_lgan, key):
    """Deterministic synthetic weights with the shapes nn.Conv2d would create."""
    dims = [(c_lgan, C1), (C1, C2), (C2, C3)]
    params = []
    for i, (cin, cout) in enumerate(dims):
        kw, kb = jax.random.split(jax.random.fold_in(key, i))
        w = jax.random.normal(kw, (3, 3, cin, cout), jnp.float32) * 0.1   # HWIO
        b = jax.random.normal(kb, (cout,), jnp.float32) * 0.01
        params.append((w, b))
    return params


def _ref_forward(x_nchw, params, mxu_dtype=jnp.float32):
    """Pure-JAX reference (lax conv).  mxu_dtype=bfloat16 mirrors the kernel's
    bf16-operand / f32-accumulation numerics; float32 is the module semantics."""
    y = x_nchw
    for w, b in params:
        y = jax.lax.conv_general_dilated(
            y.astype(mxu_dtype), w.astype(mxu_dtype), (1, 1), "SAME",
            dimension_numbers=("NCHW", "HWIO", "NCHW"),
            preferred_element_type=jnp.float32) + b[None, :, None, None]
    return y


if __name__ == "__main__":
    key = jax.random.PRNGKey(0)
    c_lgan, N, H, W = 4, 2, 16, 16

    x = jax.random.normal(jax.random.fold_in(key, 100), (N, c_lgan, H, W), jnp.float32)
    params = init_tail_params(c_lgan, key)

    out = jax.block_until_ready(tail_forward(x, params))
    assert out.shape == (N, C3, H, W), out.shape

    # tight check against a reference with matching numerics (bf16 MXU operands,
    # f32 accumulation) -> catches any geometry / masking / fusion bug.
    ref_bf16 = _ref_forward(x, params, mxu_dtype=jnp.bfloat16)
    assert jnp.allclose(out, ref_bf16, atol=1e-3, rtol=1e-3), \
        float(jnp.max(jnp.abs(out - ref_bf16)))

    # sanity check against full-f32 module semantics (gap is only bf16 rounding)
    ref_f32 = _ref_forward(x, params, mxu_dtype=jnp.float32)
    assert jnp.allclose(out, ref_f32, atol=5e-2, rtol=5e-2), \
        float(jnp.max(jnp.abs(out - ref_f32)))

    print("KERNEL_OK")
</pallas_src>

<mosaic_0001>
module attributes {stable_mosaic.version = 11 : i64} {
  func.func @_tail_kernel(%arg0: i32, %arg1: memref<1x4x332xf32, #tpu.memory_space<vmem>>, %arg2: memref<24x36xbf16, #tpu.memory_space<vmem>>, %arg3: memref<24x1xf32, #tpu.memory_space<vmem>>, %arg4: memref<12x216xbf16, #tpu.memory_space<vmem>>, %arg5: memref<12x1xf32, #tpu.memory_space<vmem>>, %arg6: memref<4x108xbf16, #tpu.memory_space<vmem>>, %arg7: memref<4x1xf32, #tpu.memory_space<vmem>>, %arg8: memref<1x288xf32, #tpu.memory_space<vmem>>, %arg9: memref<1x4x288xf32, #tpu.memory_space<vmem>>, %arg10: memref<24x332xf32, #tpu.memory_space<vmem>>, %arg11: memref<12x332xf32, #tpu.memory_space<vmem>>, %arg12: memref<216x288xf32, #tpu.memory_space<vmem>>) attributes {dimension_semantics = [#tpu.dimension_semantics<parallel>], iteration_bounds = array<i64: 2>, scalar_prefetch = 0 : i64, scratch_operands = 3 : i64, tpu.core_type = #tpu.core_type<tc>, window_params = [{transform_indices = @transform_0, window_bounds = array<i64: 1, 4, 332>}, {pipeline_mode = #tpu.pipeline_mode<synchronous>, transform_indices = @transform_1, window_bounds = array<i64: 24, 36>}, {pipeline_mode = #tpu.pipeline_mode<synchronous>, transform_indices = @transform_2, window_bounds = array<i64: 24, 1>}, {pipeline_mode = #tpu.pipeline_mode<synchronous>, transform_indices = @transform_3, window_bounds = array<i64: 12, 216>}, {pipeline_mode = #tpu.pipeline_mode<synchronous>, transform_indices = @transform_4, window_bounds = array<i64: 12, 1>}, {pipeline_mode = #tpu.pipeline_mode<synchronous>, transform_indices = @transform_5, window_bounds = array<i64: 4, 108>}, {pipeline_mode = #tpu.pipeline_mode<synchronous>, transform_indices = @transform_6, window_bounds = array<i64: 4, 1>}, {pipeline_mode = #tpu.pipeline_mode<synchronous>, transform_indices = @transform_7, window_bounds = array<i64: 1, 288>}, {transform_indices = @transform_8, window_bounds = array<i64: 1, 4, 288>}]} {
    %c0 = arith.constant 0 : index
    %c0_0 = arith.constant 0 : index
    %0 = vector.load %arg8[%c0, %c0_0] : memref<1x288xf32, #tpu.memory_space<vmem>>, vector<1x288xf32>
    %c0_1 = arith.constant 0 : index
    %c0_2 = arith.constant 0 : index
    %c0_3 = arith.constant 0 : index
    %1 = vector.load %arg1[%c0_1, %c0_2, %c0_3] : memref<1x4x332xf32, #tpu.memory_space<vmem>>, vector<1x4x288xf32>
    %2 = vector.shape_cast %1 : vector<1x4x288xf32> to vector<4x288xf32>
    %c0_4 = arith.constant 0 : index
    %c0_5 = arith.constant 0 : index
    %3 = vector.load %arg12[%c0_4, %c0_5] : memref<216x288xf32, #tpu.memory_space<vmem>>, vector<4x288xf32>
    tpu.vector_store %arg12[%c0_4, %c0_5], %2 {strides = array<i32>} : memref<216x288xf32, #tpu.memory_space<vmem>>, vector<4x288xf32>,
    %c0_6 = arith.constant 0 : index
    %c0_7 = arith.constant 0 : index
    %c1 = arith.constant 1 : index
    %4 = vector.load %arg1[%c0_6, %c0_7, %c1] : memref<1x4x332xf32, #tpu.memory_space<vmem>>, vector<1x4x288xf32>
    %5 = vector.shape_cast %4 : vector<1x4x288xf32> to vector<4x288xf32>
    %c4 = arith.constant 4 : index
    %c0_8 = arith.constant 0 : index
    %6 = vector.load %arg12[%c4, %c0_8] : memref<216x288xf32, #tpu.memory_space<vmem>>, vector<4x288xf32>
    tpu.vector_store %arg12[%c4, %c0_8], %5 {strides = array<i32>} : memref<216x288xf32, #tpu.memory_space<vmem>>, vector<4x288xf32>,
    %c0_9 = arith.constant 0 : index
    %c0_10 = arith.constant 0 : index
    %c2 = arith.constant 2 : index
    %7 = vector.load %arg1[%c0_9, %c0_10, %c2] : memref<1x4x332xf32, #tpu.memory_space<vmem>>, vector<1x4x288xf32>
    %8 = vector.shape_cast %7 : vector<1x4x288xf32> to vector<4x288xf32>
    %c8 = arith.constant 8 : index
    %c0_11 = arith.constant 0 : index
    %9 = vector.load %arg12[%c8, %c0_11] : memref<216x288xf32, #tpu.memory_space<vmem>>, vector<4x288xf32>
    tpu.vector_store %arg12[%c8, %c0_11], %8 {strides = array<i32>} : memref<216x288xf32, #tpu.memory_space<vmem>>, vector<4x288xf32>,
    %c0_12 = arith.constant 0 : index
    %c0_13 = arith.constant 0 : index
    %c18 = arith.constant 18 : index
    %10 = vector.load %arg1[%c0_12, %c0_13, %c18] : memref<1x4x332xf32, #tpu.memory_space<vmem>>, vector<1x4x288xf32>
    %11 = vector.shape_cast %10 : vector<1x4x288xf32> to vector<4x288xf32>
    %c12 = arith.constant 12 : index
    %c0_14 = arith.constant 0 : index
    %12 = vector.load %arg12[%c12, %c0_14] : memref<216x288xf32, #tpu.memory_space<vmem>>, vector<4x288xf32>
    tpu.vector_store %arg12[%c12, %c0_14], %11 {strides = array<i32>} : memref<216x288xf32, #tpu.memory_space<vmem>>, vector<4x288xf32>,
    %c0_15 = arith.constant 0 : index
    %c0_16 = arith.constant 0 : index
    %c19 = arith.constant 19 : index
    %13 = vector.load %arg1[%c0_15, %c0_16, %c19] : memref<1x4x332xf32, #tpu.memory_space<vmem>>, vector<1x4x288xf32>
    %14 = vector.shape_cast %13 : vector<1x4x288xf32> to vector<4x288xf32>
    %c16 = arith.constant 16 : index
    %c0_17 = arith.constant 0 : index
    %15 = vector.load %arg12[%c16, %c0_17] : memref<216x288xf32, #tpu.memory_space<vmem>>, vector<4x288xf32>
    tpu.vector_store %arg12[%c16, %c0_17], %14 {strides = array<i32>} : memref<216x288xf32, #tpu.memory_space<vmem>>, vector<4x288xf32>,
    %c0_18 = arith.constant 0 : index
    %c0_19 = arith.constant 0 : index
    %c20 = arith.constant 20 : index
    %16 = vector.load %arg1[%c0_18, %c0_19, %c20] : memref<1x4x332xf32, #tpu.memory_space<vmem>>, vector<1x4x288xf32>
    %17 = vector.shape_cast %16 : vector<1x4x288xf32> to vector<4x288xf32>
    %c20_20 = arith.constant 20 : index
    %c0_21 = arith.constant 0 : index
    %18 = vector.load %arg12[%c20_20, %c0_21] : memref<216x288xf32, #tpu.memory_space<vmem>>, vector<4x288xf32>
    tpu.vector_store %arg12[%c20_20, %c0_21], %17 {strides = array<i32>} : memref<216x288xf32, #tpu.memory_space<vmem>>, vector<4x288xf32>,
    %c0_22 = arith.constant 0 : index
    %c0_23 = arith.constant 0 : index
    %c36 = arith.constant 36 : index
    %19 = vector.load %arg1[%c0_22, %c0_23, %c36] : memref<1x4x332xf32, #tpu.memory_space<vmem>>, vector<1x4x288xf32>
    %20 = vector.shape_cast %19 : vector<1x4x288xf32> to vector<4x288xf32>
    %c24 = arith.constant 24 : index
    %c0_24 = arith.constant 0 : index
    %21 = vector.load %arg12[%c24, %c0_24] : memref<216x288xf32, #tpu.memory_space<vmem>>, vector<4x288xf32>
    tpu.vector_store %arg12[%c24, %c0_24], %20 {strides = array<i32>} : memref<216x288xf32, #tpu.memory_space<vmem>>, vector<4x288xf32>,
    %c0_25 = arith.constant 0 : index
    %c0_26 = arith.constant 0 : index
    %c37 = arith.constant 37 : index
    %22 = vector.load %arg1[%c0_25, %c0_26, %c37] : memref<1x4x332xf32, #tpu.memory_space<vmem>>, vector<1x4x288xf32>
    %23 = vector.shape_cast %22 : vector<1x4x288xf32> to vector<4x288xf32>
    %c28 = arith.constant 28 : index
    %c0_27 = arith.constant 0 : index
    %24 = vector.load %arg12[%c28, %c0_27] : memref<216x288xf32, #tpu.memory_space<vmem>>, vector<4x288xf32>
    tpu.vector_store %arg12[%c28, %c0_27], %23 {strides = array<i32>} : memref<216x288xf32, #tpu.memory_space<vmem>>, vector<4x288xf32>,
    %c0_28 = arith.constant 0 : index
    %c0_29 = arith.constant 0 : index
    %c38 = arith.constant 38 : index
    %25 = vector.load %arg1[%c0_28, %c0_29, %c38] : memref<1x4x332xf32, #tpu.memory_space<vmem>>, vector<1x4x288xf32>
    %26 = vector.shape_cast %25 : vector<1x4x288xf32> to vector<4x288xf32>
    %c32 = arith.constant 32 : index
    %c0_30 = arith.constant 0 : index
    %27 = vector.load %arg12[%c32, %c0_30] : memref<216x288xf32, #tpu.memory_space<vmem>>, vector<4x288xf32>
    tpu.vector_store %arg12[%c32, %c0_30], %26 {strides = array<i32>} : memref<216x288xf32, #tpu.memory_space<vmem>>, vector<4x288xf32>,
    %c0_31 = arith.constant 0 : index
    %c0_32 = arith.constant 0 : index
    %28 = vector.load %arg12[%c0_31, %c0_32] : memref<216x288xf32, #tpu.memory_space<vmem>>, vector<36x288xf32>
    %29 = arith.truncf %28 : vector<36x288xf32> to vector<36x288xbf16>
    %c0_33 = arith.constant 0 : index
    %c0_34 = arith.constant 0 : index
    %30 = vector.load %arg2[%c0_33, %c0_34] : memref<24x36xbf16, #tpu.memory_space<vmem>>, vector<24x36xbf16>
    %cst = arith.constant dense<0.000000e+00> : vector<24x288xf32>
    %31 = tpu.matmul %30, %29, %cst {dimension_numbers = #tpu.dot_dimension_numbers<[1], [0], [0], [1], [0, 0, 1, 1], [], []>} : vector<24x36xbf16>, vector<36x288xbf16>, vector<24x288xf32> -> vector<24x288xf32>
    %c0_35 = arith.constant 0 : index
    %c0_36 = arith.constant 0 : index
    %32 = vector.load %arg3[%c0_35, %c0_36] : memref<24x1xf32, #tpu.memory_space<vmem>>, vector<24x1xf32>
    %33 = vector.broadcast %32 : vector<24x1xf32> to vector<24x288xf32>
    %34 = arith.addf %31, %33 : vector<24x288xf32>
    %cst_37 = arith.constant 0.000000e+00 : f32
    %35 = vector.broadcast %cst_37 : f32 to vector<24x332xf32>
    %c0_38 = arith.constant 0 : index
    %c0_39 = arith.constant 0 : index
    %36 = vector.load %arg10[%c0_38, %c0_39] : memref<24x332xf32, #tpu.memory_space<vmem>>, vector<24x332xf32>
    tpu.vector_store %arg10[%c0_38, %c0_39], %35 {strides = array<i32>} : memref<24x332xf32, #tpu.memory_space<vmem>>, vector<24x332xf32>,
    %37 = vector.broadcast %0 : vector<1x288xf32> to vector<24x288xf32>
    %38 = arith.mulf %34, %37 : vector<24x288xf32>
    %c0_40 = arith.constant 0 : index
    %c19_41 = arith.constant 19 : index
    %39 = vector.load %arg10[%c0_40, %c19_41] : memref<24x332xf32, #tpu.memory_space<vmem>>, vector<24x288xf32>
    tpu.vector_store %arg10[%c0_40, %c19_41], %38 {strides = array<i32>} : memref<24x332xf32, #tpu.memory_space<vmem>>, vector<24x288xf32>,
    %c0_42 = arith.constant 0 : index
    %c0_43 = arith.constant 0 : index
    %40 = vector.load %arg10[%c0_42, %c0_43] : memref<24x332xf32, #tpu.memory_space<vmem>>, vector<24x288xf32>
    %c0_44 = arith.constant 0 : index
    %c0_45 = arith.constant 0 : index
    %41 = vector.load %arg12[%c0_44, %c0_45] : memref<216x288xf32, #tpu.memory_space<vmem>>, vector<24x288xf32>
    tpu.vector_store %arg12[%c0_44, %c0_45], %40 {strides = array<i32>} : memref<216x288xf32, #tpu.memory_space<vmem>>, vector<24x288xf32>,
    %c0_46 = arith.constant 0 : index
    %c1_47 = arith.constant 1 : index
    %42 = vector.load %arg10[%c0_46, %c1_47] : memref<24x332xf32, #tpu.memory_space<vmem>>, vector<24x288xf32>
    %c24_48 = arith.constant 24 : index
    %c0_49 = arith.constant 0 : index
    %43 = vector.load %arg12[%c24_48, %c0_49] : memref<216x288xf32, #tpu.memory_space<vmem>>, vector<24x288xf32>
    tpu.vector_store %arg12[%c24_48, %c0_49], %42 {strides = array<i32>} : memref<216x288xf32, #tpu.memory_space<vmem>>, vector<24x288xf32>,
    %c0_50 = arith.constant 0 : index
    %c2_51 = arith.constant 2 : index
    %44 = vector.load %arg10[%c0_50, %c2_51] : memref<24x332xf32, #tpu.memory_space<vmem>>, vector<24x288xf32>
    %c48 = arith.constant 48 : index
    %c0_52 = arith.constant 0 : index
    %45 = vector.load %arg12[%c48, %c0_52] : memref<216x288xf32, #tpu.memory_space<vmem>>, vector<24x288xf32>
    tpu.vector_store %arg12[%c48, %c0_52], %44 {strides = array<i32>} : memref<216x288xf32, #tpu.memory_space<vmem>>, vector<24x288xf32>,
    %c0_53 = arith.constant 0 : index
    %c18_54 = arith.constant 18 : index
    %46 = vector.load %arg10[%c0_53, %c18_54] : memref<24x332xf32, #tpu.memory_space<vmem>>, vector<24x288xf32>
    %c72 = arith.constant 72 : index
    %c0_55 = arith.constant 0 : index
    %47 = vector.load %arg12[%c72, %c0_55] : memref<216x288xf32, #tpu.memory_space<vmem>>, vector<24x288xf32>
    tpu.vector_store %arg12[%c72, %c0_55], %46 {strides = array<i32>} : memref<216x288xf32, #tpu.memory_space<vmem>>, vector<24x288xf32>,
    %c0_56 = arith.constant 0 : index
    %c19_57 = arith.constant 19 : index
    %48 = vector.load %arg10[%c0_56, %c19_57] : memref<24x332xf32, #tpu.memory_space<vmem>>, vector<24x288xf32>
    %c96 = arith.constant 96 : index
    %c0_58 = arith.constant 0 : index
    %49 = vector.load %arg12[%c96, %c0_58] : memref<216x288xf32, #tpu.memory_space<vmem>>, vector<24x288xf32>
    tpu.vector_store %arg12[%c96, %c0_58], %48 {strides = array<i32>} : memref<216x288xf32, #tpu.memory_space<vmem>>, vector<24x288xf32>,
    %c0_59 = arith.constant 0 : index
    %c20_60 = arith.constant 20 : index
    %50 = vector.load %arg10[%c0_59, %c20_60] : memref<24x332xf32, #tpu.memory_space<vmem>>, vector<24x288xf32>
    %c120 = arith.constant 120 : index
    %c0_61 = arith.constant 0 : index
    %51 = vector.load %arg12[%c120, %c0_61] : memref<216x288xf32, #tpu.memory_space<vmem>>, vector<24x288xf32>
    tpu.vector_store %arg12[%c120, %c0_61], %50 {strides = array<i32>} : memref<216x288xf32, #tpu.memory_space<vmem>>, vector<24x288xf32>,
    %c0_62 = arith.constant 0 : index
    %c36_63 = arith.constant 36 : index
    %52 = vector.load %arg10[%c0_62, %c36_63] : memref<24x332xf32, #tpu.memory_space<vmem>>, vector<24x288xf32>
    %c144 = arith.constant 144 : index
    %c0_64 = arith.constant 0 : index
    %53 = vector.load %arg12[%c144, %c0_64] : memref<216x288xf32, #tpu.memory_space<vmem>>, vector<24x288xf32>
    tpu.vector_store %arg12[%c144, %c0_64], %52 {strides = array<i32>} : memref<216x288xf32, #tpu.memory_space<vmem>>, vector<24x288xf32>,
    %c0_65 = arith.constant 0 : index
    %c37_66 = arith.constant 37 : index
    %54 = vector.load %arg10[%c0_65, %c37_66] : memref<24x332xf32, #tpu.memory_space<vmem>>, vector<24x288xf32>
    %c168 = arith.constant 168 : index
    %c0_67 = arith.constant 0 : index
    %55 = vector.load %arg12[%c168, %c0_67] : memref<216x288xf32, #tpu.memory_space<vmem>>, vector<24x288xf32>
    tpu.vector_store %arg12[%c168, %c0_67], %54 {strides = array<i32>} : memref<216x288xf32, #tpu.memory_space<vmem>>, vector<24x288xf32>,
    %c0_68 = arith.constant 0 : index
    %c38_69 = arith.constant 38 : index
    %56 = vector.load %arg10[%c0_68, %c38_69] : memref<24x332xf32, #tpu.memory_space<vmem>>, vector<24x288xf32>
    %c192 = arith.constant 192 : index
    %c0_70 = arith.constant 0 : index
    %57 = vector.load %arg12[%c192, %c0_70] : memref<216x288xf32, #tpu.memory_space<vmem>>, vector<24x288xf32>
    tpu.vector_store %arg12[%c192, %c0_70], %56 {strides = array<i32>} : memref<216x288xf32, #tpu.memory_space<vmem>>, vector<24x288xf32>,
    %c0_71 = arith.constant 0 : index
    %c0_72 = arith.constant 0 : index
    %58 = vector.load %arg12[%c0_71, %c0_72] : memref<216x288xf32, #tpu.memory_space<vmem>>, vector<216x288xf32>
    %59 = arith.truncf %58 : vector<216x288xf32> to vector<216x288xbf16>
    %c0_73 = arith.constant 0 : index
    %c0_74 = arith.constant 0 : index
    %60 = vector.load %arg4[%c0_73, %c0_74] : memref<12x216xbf16, #tpu.memory_space<vmem>>, vector<12x216xbf16>
    %cst_75 = arith.constant dense<0.000000e+00> : vector<12x288xf32>
    %61 = tpu.matmul %60, %59, %cst_75 {dimension_numbers = #tpu.dot_dimension_numbers<[1], [0], [0], [1], [0, 0, 1, 1], [], []>} : vector<12x216xbf16>, vector<216x288xbf16>, vector<12x288xf32> -> vector<12x288xf32>
    %c0_76 = arith.constant 0 : index
    %c0_77 = arith.constant 0 : index
    %62 = vector.load %arg5[%c0_76, %c0_77] : memref<12x1xf32, #tpu.memory_space<vmem>>, vector<12x1xf32>
    %63 = vector.broadcast %62 : vector<12x1xf32> to vector<12x288xf32>
    %64 = arith.addf %61, %63 : vector<12x288xf32>
    %cst_78 = arith.constant 0.000000e+00 : f32
    %65 = vector.broadcast %cst_78 : f32 to vector<12x332xf32>
    %c0_79 = arith.constant 0 : index
    %c0_80 = arith.constant 0 : index
    %66 = vector.load %arg11[%c0_79, %c0_80] : memref<12x332xf32, #tpu.memory_space<vmem>>, vector<12x332xf32>
    tpu.vector_store %arg11[%c0_79, %c0_80], %65 {strides = array<i32>} : memref<12x332xf32, #tpu.memory_space<vmem>>, vector<12x332xf32>,
    %67 = vector.broadcast %0 : vector<1x288xf32> to vector<12x288xf32>
    %68 = arith.mulf %64, %67 : vector<12x288xf32>
    %c0_81 = arith.constant 0 : index
    %c19_82 = arith.constant 19 : index
    %69 = vector.load %arg11[%c0_81, %c19_82] : memref<12x332xf32, #tpu.memory_space<vmem>>, vector<12x288xf32>
    tpu.vector_store %arg11[%c0_81, %c19_82], %68 {strides = array<i32>} : memref<12x332xf32, #tpu.memory_space<vmem>>, vector<12x288xf32>,
    %c0_83 = arith.constant 0 : index
    %c0_84 = arith.constant 0 : index
    %70 = vector.load %arg11[%c0_83, %c0_84] : memref<12x332xf32, #tpu.memory_space<vmem>>, vector<12x288xf32>
    %c0_85 = arith.constant 0 : index
    %c0_86 = arith.constant 0 : index
    %71 = vector.load %arg12[%c0_85, %c0_86] : memref<216x288xf32, #tpu.memory_space<vmem>>, vector<12x288xf32>
    tpu.vector_store %arg12[%c0_85, %c0_86], %70 {strides = array<i32>} : memref<216x288xf32, #tpu.memory_space<vmem>>, vector<12x288xf32>,
    %c0_87 = arith.constant 0 : index
    %c1_88 = arith.constant 1 : index
    %72 = vector.load %arg11[%c0_87, %c1_88] : memref<12x332xf32, #tpu.memory_space<vmem>>, vector<12x288xf32>
    %c12_89 = arith.constant 12 : index
    %c0_90 = arith.constant 0 : index
    %73 = vector.load %arg12[%c12_89, %c0_90] : memref<216x288xf32, #tpu.memory_space<vmem>>, vector<12x288xf32>
    tpu.vector_store %arg12[%c12_89, %c0_90], %72 {strides = array<i32>} : memref<216x288xf32, #tpu.memory_space<vmem>>, vector<12x288xf32>,
    %c0_91 = arith.constant 0 : index
    %c2_92 = arith.constant 2 : index
    %74 = vector.load %arg11[%c0_91, %c2_92] : memref<12x332xf32, #tpu.memory_space<vmem>>, vector<12x288xf32>
    %c24_93 = arith.constant 24 : index
    %c0_94 = arith.constant 0 : index
    %75 = vector.load %arg12[%c24_93, %c0_94] : memref<216x288xf32, #tpu.memory_space<vmem>>, vector<12x288xf32>
    tpu.vector_store %arg12[%c24_93, %c0_94], %74 {strides = array<i32>} : memref<216x288xf32, #tpu.memory_space<vmem>>, vector<12x288xf32>,
    %c0_95 = arith.constant 0 : index
    %c18_96 = arith.constant 18 : index
    %76 = vector.load %arg11[%c0_95, %c18_96] : memref<12x332xf32, #tpu.memory_space<vmem>>, vector<12x288xf32>
    %c36_97 = arith.constant 36 : index
    %c0_98 = arith.constant 0 : index
    %77 = vector.load %arg12[%c36_97, %c0_98] : memref<216x288xf32, #tpu.memory_space<vmem>>, vector<12x288xf32>
    tpu.vector_store %arg12[%c36_97, %c0_98], %76 {strides = array<i32>} : memref<216x288xf32, #tpu.memory_space<vmem>>, vector<12x288xf32>,
    %c0_99 = arith.constant 0 : index
    %c19_100 = arith.constant 19 : index
    %78 = vector.load %arg11[%c0_99, %c19_100] : memref<12x332xf32, #tpu.memory_space<vmem>>, vector<12x288xf32>
    %c48_101 = arith.constant 48 : index
    %c0_102 = arith.constant 0 : index
    %79 = vector.load %arg12[%c48_101, %c0_102] : memref<216x288xf32, #tpu.memory_space<vmem>>, vector<12x288xf32>
    tpu.vector_store %arg12[%c48_101, %c0_102], %78 {strides = array<i32>} : memref<216x288xf32, #tpu.memory_space<vmem>>, vector<12x288xf32>,
    %c0_103 = arith.constant 0 : index
    %c20_104 = arith.constant 20 : index
    %80 = vector.load %arg11[%c0_103, %c20_104] : memref<12x332xf32, #tpu.memory_space<vmem>>, vector<12x288xf32>
    %c60 = arith.constant 60 : index
    %c0_105 = arith.constant 0 : index
    %81 = vector.load %arg12[%c60, %c0_105] : memref<216x288xf32, #tpu.memory_space<vmem>>, vector<12x288xf32>
    tpu.vector_store %arg12[%c60, %c0_105], %80 {strides = array<i32>} : memref<216x288xf32, #tpu.memory_space<vmem>>, vector<12x288xf32>,
    %c0_106 = arith.constant 0 : index
    %c36_107 = arith.constant 36 : index
    %82 = vector.load %arg11[%c0_106, %c36_107] : memref<12x332xf32, #tpu.memory_space<vmem>>, vector<12x288xf32>
    %c72_108 = arith.constant 72 : index
    %c0_109 = arith.constant 0 : index
    %83 = vector.load %arg12[%c72_108, %c0_109] : memref<216x288xf32, #tpu.memory_space<vmem>>, vector<12x288xf32>
    tpu.vector_store %arg12[%c72_108, %c0_109], %82 {strides = array<i32>} : memref<216x288xf32, #tpu.memory_space<vmem>>, vector<12x288xf32>,
    %c0_110 = arith.constant 0 : index
    %c37_111 = arith.constant 37 : index
    %84 = vector.load %arg11[%c0_110, %c37_111] : memref<12x332xf32, #tpu.memory_space<vmem>>, vector<12x288xf32>
    %c84 = arith.constant 84 : index
    %c0_112 = arith.constant 0 : index
    %85 = vector.load %arg12[%c84, %c0_112] : memref<216x288xf32, #tpu.memory_space<vmem>>, vector<12x288xf32>
    tpu.vector_store %arg12[%c84, %c0_112], %84 {strides = array<i32>} : memref<216x288xf32, #tpu.memory_space<vmem>>, vector<12x288xf32>,
    %c0_113 = arith.constant 0 : index
    %c38_114 = arith.constant 38 : index
    %86 = vector.load %arg11[%c0_113, %c38_114] : memref<12x332xf32, #tpu.memory_space<vmem>>, vector<12x288xf32>
    %c96_115 = arith.constant 96 : index
    %c0_116 = arith.constant 0 : index
    %87 = vector.load %arg12[%c96_115, %c0_116] : memref<216x288xf32, #tpu.memory_space<vmem>>, vector<12x288xf32>
    tpu.vector_store %arg12[%c96_115, %c0_116], %86 {strides = array<i32>} : memref<216x288xf32, #tpu.memory_space<vmem>>, vector<12x288xf32>,
    %c0_117 = arith.constant 0 : index
    %c0_118 = arith.constant 0 : index
    %88 = vector.load %arg12[%c0_117, %c0_118] : memref<216x288xf32, #tpu.memory_space<vmem>>, vector<108x288xf32>
    %89 = arith.truncf %88 : vector<108x288xf32> to vector<108x288xbf16>
    %c0_119 = arith.constant 0 : index
    %c0_120 = arith.constant 0 : index
    %90 = vector.load %arg6[%c0_119, %c0_120] : memref<4x108xbf16, #tpu.memory_space<vmem>>, vector<4x108xbf16>
    %cst_121 = arith.constant dense<0.000000e+00> : vector<4x288xf32>
    %91 = tpu.matmul %90, %89, %cst_121 {dimension_numbers = #tpu.dot_dimension_numbers<[1], [0], [0], [1], [0, 0, 1, 1], [], []>} : vector<4x108xbf16>, vector<108x288xbf16>, vector<4x288xf32> -> vector<4x288xf32>
    %c0_122 = arith.constant 0 : index
    %c0_123 = arith.constant 0 : index
    %92 = vector.load %arg7[%c0_122, %c0_123] : memref<4x1xf32, #tpu.memory_space<vmem>>, vector<4x1xf32>
    %93 = vector.broadcast %92 : vector<4x1xf32> to vector<4x288xf32>
    %94 = arith.addf %91, %93 : vector<4x288xf32>
    %c0_124 = arith.constant 0 : index
    %c0_125 = arith.constant 0 : index
    %c0_126 = arith.constant 0 : index
    %95 = vector.load %arg9[%c0_124, %c0_125, %c0_126] : memref<1x4x288xf32, #tpu.memory_space<vmem>>, vector<1x4x288xf32>
    %96 = vector.shape_cast %95 : vector<1x4x288xf32> to vector<4x288xf32>
    %97 = vector.shape_cast %94 : vector<4x288xf32> to vector<1x4x288xf32>
    tpu.vector_store %arg9[%c0_124, %c0_125, %c0_126], %97 {strides = array<i32>} : memref<1x4x288xf32, #tpu.memory_space<vmem>>, vector<1x4x288xf32>,
    return
  }
  func.func @transform_0(%arg0: i32) -> (i32, i32, i32) {
    %c0_i32 = arith.constant 0 : i32
    %c0_i32_0 = arith.constant 0 : i32
    %c0_i32_1 = arith.constant 0 : i32
    return %arg0, %c0_i32, %c0_i32_0 : i32, i32, i32
  }
  func.func @transform_1(%arg0: i32) -> (i32, i32) {
    %c0_i32 = arith.constant 0 : i32
    %c0_i32_0 = arith.constant 0 : i32
    %c0_i32_1 = arith.constant 0 : i32
    return %c0_i32, %c0_i32_0 : i32, i32
  }
  func.func @transform_2(%arg0: i32) -> (i32, i32) {
    %c0_i32 = arith.constant 0 : i32
    %c0_i32_0 = arith.constant 0 : i32
    %c0_i32_1 = arith.constant 0 : i32
    return %c0_i32, %c0_i32_0 : i32, i32
  }
  func.func @transform_3(%arg0: i32) -> (i32, i32) {
    %c0_i32 = arith.constant 0 : i32
    %c0_i32_0 = arith.constant 0 : i32
    %c0_i32_1 = arith.constant 0 : i32
    return %c0_i32, %c0_i32_0 : i32, i32
  }
  func.func @transform_4(%arg0: i32) -> (i32, i32) {
    %c0_i32 = arith.constant 0 : i32
    %c0_i32_0 = arith.constant 0 : i32
    %c0_i32_1 = arith.constant 0 : i32
    return %c0_i32, %c0_i32_0 : i32, i32
  }
  func.func @transform_5(%arg0: i32) -> (i32, i32) {
    %c0_i32 = arith.constant 0 : i32
    %c0_i32_0 = arith.constant 0 : i32
    %c0_i32_1 = arith.constant 0 : i32
    return %c0_i32, %c0_i32_0 : i32, i32
  }
  func.func @transform_6(%arg0: i32) -> (i32, i32) {
    %c0_i32 = arith.constant 0 : i32
    %c0_i32_0 = arith.constant 0 : i32
    %c0_i32_1 = arith.constant 0 : i32
    return %c0_i32, %c0_i32_0 : i32, i32
  }
  func.func @transform_7(%arg0: i32) -> (i32, i32) {
    %c0_i32 = arith.constant 0 : i32
    %c0_i32_0 = arith.constant 0 : i32
    %c0_i32_1 = arith.constant 0 : i32
    return %c0_i32, %c0_i32_0 : i32, i32
  }
  func.func @transform_8(%arg0: i32) -> (i32, i32, i32) {
    %c0_i32 = arith.constant 0 : i32
    %c0_i32_0 = arith.constant 0 : i32
    %c0_i32_1 = arith.constant 0 : i32
    return %arg0, %c0_i32, %c0_i32_0 : i32, i32, i32
  }
}

</mosaic_0001>

<llo_original>
// kernel: tpu_custom_call.1
$region0: #{tpu_custom_call.1}
  #allocation0 [shape = 'u32[]', space=smem, size = 0x4, offset = 0x4, fixed_abs, tag = 'smem constant byte address 0x4 - core index']
  #allocation1 [shape = 'u32[144,128]{1,0:T(1,128)}', space=vmem, size = 0x12000, scoped, tag = 'internal scratch']
  #allocation2 [shape = 'f32[24,332]{1,0:T(8,128)}', space=vmem, size = 0x9000, scoped, tag = 'scratch operand']
  #allocation3 [shape = 'f32[12,332]{1,0:T(8,128)}', space=vmem, size = 0x6000, scoped, tag = 'scratch operand']
  #allocation4 [shape = 'f32[216,288]{1,0:T(8,128)}', space=vmem, size = 0x51000, scoped, tag = 'scratch operand']
  %s0 = inlined_call_operand.vmem [shape: f32[2,4,332], index: 0, kind: input, shape index: {}]
  %s1 = inlined_call_operand.hbm [shape: bf16[24,36], index: 1, kind: input, shape index: {}]
  %s2 = inlined_call_operand.vmem [shape: f32[24,1], index: 2, kind: input, shape index: {}]
  %s3 = inlined_call_operand.vmem [shape: bf16[12,216], index: 3, kind: input, shape index: {}]
  %s4 = inlined_call_operand.vmem [shape: f32[12,1], index: 4, kind: input, shape index: {}]
  %s5 = inlined_call_operand.vmem [shape: bf16[4,108], index: 5, kind: input, shape index: {}]
  %s6 = inlined_call_operand.vmem [shape: f32[4,1], index: 6, kind: input, shape index: {}]
  %s7 = inlined_call_operand.vmem [shape: f32[1,288], index: 7, kind: input, shape index: {}]
  %s8 = inlined_call_operand.hbm [shape: f32[2,4,288], index: 8, kind: output, shape index: {}]
  %s9 = sld [smem:[#allocation0]]
  $region69: #{tpu_custom_call.1} parent=0
    _
  %s11 = ssub.s32 1, %s9
  %s12 = scalar_select 0, %s11, %s9
  $region1: #{tpu_custom_call.1} parent=0
    #allocation5 [shape = 'u8[6144]{0}', space=vmem, size = 0x1800, scoped, tag = 'input window, operand 1, single buffered']
    #allocation6 [shape = 's32[2]{0}', space=sflag, size = 0x8, scoped, tag = 'scoped memory for tpu_custom_call.1']
    #allocation7 [shape = 's32[2]{0}', space=sflag, size = 0x8, scoped, tag = 'scoped memory for tpu_custom_call.1']
    #allocation8 [shape = 'u8[12288]{0}', space=vmem, size = 0x3000, scoped, tag = 'output window, operand 0']
    %13 = vsyncpa [#allocation6], 0
    %14 = vsyncpa [#allocation7], 0
    %s15 = scalar_lea.sflag [#allocation7], 1
    %16 = vsyncpa %s15, 0
    loop: start=0, step=1, limit=4
    $region2: #{tpu_custom_call.1} parent=1 // loop_pre_header
      _
    $region3: #{tpu_custom_call.1} parent=1 // loop_header
      %s18 = sphi 0, %s22
      %p19 = scmp.ge.s32.totalorder %s18, 4
      %s28 = sphi 0, %s30
      %s31 = sphi 0, %s28
      %s32 = sphi 0, %s31
      %s48 = sphi 0, %s32
      %s52 = sphi 0, %s52
      %s54 = sphi 0, %s52
      %s55 = sphi 0, %s54
      %s69 = sphi 0, %s55
      %s73 = sphi 0, %s73
      %s75 = sphi 0, %s73
      %s76 = sphi 0, %s75
      %s90 = sphi 0, %s76
      %s94 = sphi 0, %s94
      %s96 = sphi 0, %s94
      %s97 = sphi 0, %s96
      %s111 = sphi 0, %s97
      %s115 = sphi 0, %s115
      %s117 = sphi 0, %s115
      %s118 = sphi 0, %s117
      %s132 = sphi 0, %s118
      %s136 = sphi 0, %s136
      %s138 = sphi 0, %s136
      %s139 = sphi 0, %s138
      %s153 = sphi 0, %s139
      %s157 = sphi 0, %s157
      %s159 = sphi 0, %s157
      %s160 = sphi 0, %s159
      %s174 = sphi 0, %s160
      %s178 = sphi 0, %s178
      %s180 = sphi 0, %s178
      %s181 = sphi 0, %s180
      %s195 = sphi 0, %s181
      %s201 = sphi 0, %s203
      %s204 = sphi 0, %s201
      %s205 = sphi 0, %s204
      %s221 = sphi 0, %s205
    $region4: #{tpu_custom_call.1} parent=1 // loop_header_branch
      %21 = sbr.rel (%p19) target = $region8
    $region5: #{tpu_custom_call.1} parent=1 // loop_body
      %s23 = ssub.s32 %s18, 1
      %s24 = ssub.s32 %s18, 2
      %s25 = sadd.s32 %s18, 1
      %s26 = ssub.s32 %s18, %s25
      %p27 = scmp.eq.s32.totalorder %s26, 0
      %s29 = sadd.s32 %s28, 1
      %s30 = scalar_select %p27, %s28, %s29
      %p33 = pneg %p27
      %p34 = scmp.eq.s32.totalorder %s18, 1
      %p35 = por %p33, %p34
      %p36 = scmp.ne.s32.totalorder %s28, %s31
      %p37 = scmp.eq.s32.totalorder %s18, 0
      %p38 = por %p36, %p37
      %p39 = scmp.ne.s32.totalorder %s28, %s31
      %p40 = scmp.eq.s32.totalorder %s23, 1
      %p41 = por %p39, %p40
      %p42 = scmp.ne.s32.totalorder %s31, %s32
      %p43 = scmp.eq.s32.totalorder %s23, 0
      %p44 = por %p42, %p43
      %p45 = scmp.ne.s32.totalorder %s31, %s32
      %p46 = scmp.eq.s32.totalorder %s24, 1
      %p47 = por %p45, %p46
      %p49 = scmp.ne.s32.totalorder %s32, %s48
      %p50 = scmp.eq.s32.totalorder %s24, 0
      %p51 = por %p49, %p50
      %s53 = sadd.s32 %s52, 1
      %p56 = scmp.eq.s32.totalorder %s18, 1
      %p57 = scmp.ne.s32.totalorder %s52, %s54
      %p58 = scmp.eq.s32.totalorder %s18, 0
      %p59 = por %p57, %p58
      %p60 = scmp.ne.s32.totalorder %s52, %s54
      %p61 = scmp.eq.s32.totalorder %s23, 1
      %p62 = por %p60, %p61
      %p63 = scmp.ne.s32.totalorder %s54, %s55
      %p64 = scmp.eq.s32.totalorder %s23, 0
      %p65 = por %p63, %p64
      %p66 = scmp.ne.s32.totalorder %s54, %s55
      %p67 = scmp.eq.s32.totalorder %s24, 1
      %p68 = por %p66, %p67
      %p70 = scmp.ne.s32.totalorder %s55, %s69
      %p71 = scmp.eq.s32.totalorder %s24, 0
      %p72 = por %p70, %p71
      %s74 = sadd.s32 %s73, 1
      %p77 = scmp.eq.s32.totalorder %s18, 1
      %p78 = scmp.ne.s32.totalorder %s73, %s75
      %p79 = scmp.eq.s32.totalorder %s18, 0
      %p80 = por %p78, %p79
      %p81 = scmp.ne.s32.totalorder %s73, %s75
      %p82 = scmp.eq.s32.totalorder %s23, 1
      %p83 = por %p81, %p82
      %p84 = scmp.ne.s32.totalorder %s75, %s76
      %p85 = scmp.eq.s32.totalorder %s23, 0
      %p86 = por %p84, %p85
      %p87 = scmp.ne.s32.totalorder %s75, %s76
      %p88 = scmp.eq.s32.totalorder %s24, 1
      %p89 = por %p87, %p88
      %p91 = scmp.ne.s32.totalorder %s76, %s90
      %p92 = scmp.eq.s32.totalorder %s24, 0
      %p93 = por %p91, %p92
      %s95 = sadd.s32 %s94, 1
      %p98 = scmp.eq.s32.totalorder %s18, 1
      %p99 = scmp.ne.s32.totalorder %s94, %s96
      %p100 = scmp.eq.s32.totalorder %s18, 0
      %p101 = por %p99, %p100
      %p102 = scmp.ne.s32.totalorder %s94, %s96
      %p103 = scmp.eq.s32.totalorder %s23, 1
      %p104 = por %p102, %p103
      %p105 = scmp.ne.s32.totalorder %s96, %s97
      %p106 = scmp.eq.s32.totalorder %s23, 0
      %p107 = por %p105, %p106
      %p108 = scmp.ne.s32.totalorder %s96, %s97
      %p109 = scmp.eq.s32.totalorder %s24, 1
      %p110 = por %p108, %p109
      %p112 = scmp.ne.s32.totalorder %s97, %s111
      %p113 = scmp.eq.s32.totalorder %s24, 0
      %p114 = por %p112, %p113
      %s116 = sadd.s32 %s115, 1
      %p119 = scmp.eq.s32.totalorder %s18, 1
      %p120 = scmp.ne.s32.totalorder %s115, %s117
      %p121 = scmp.eq.s32.totalorder %s18, 0
      %p122 = por %p120, %p121
      %p123 = scmp.ne.s32.totalorder %s115, %s117
      %p124 = scmp.eq.s32.totalorder %s23, 1
      %p125 = por %p123, %p124
      %p126 = scmp.ne.s32.totalorder %s117, %s118
      %p127 = scmp.eq.s32.totalorder %s23, 0
      %p128 = por %p126, %p127
      %p129 = scmp.ne.s32.totalorder %s117, %s118
      %p130 = scmp.eq.s32.totalorder %s24, 1
      %p131 = por %p129, %p130
      %p133 = scmp.ne.s32.totalorder %s118, %s132
      %p134 = scmp.eq.s32.totalorder %s24, 0
      %p135 = por %p133, %p134
      %s137 = sadd.s32 %s136, 1
      %p140 = scmp.eq.s32.totalorder %s18, 1
      %p141 = scmp.ne.s32.totalorder %s136, %s138
      %p142 = scmp.eq.s32.totalorder %s18, 0
      %p143 = por %p141, %p142
      %p144 = scmp.ne.s32.totalorder %s136, %s138
      %p145 = scmp.eq.s32.totalorder %s23, 1
      %p146 = por %p144, %p145
      %p147 = scmp.ne.s32.totalorder %s138, %s139
      %p148 = scmp.eq.s32.totalorder %s23, 0
      %p149 = por %p147, %p148
      %p150 = scmp.ne.s32.totalorder %s138, %s139
      %p151 = scmp.eq.s32.totalorder %s24, 1
      %p152 = por %p150, %p151
      %p154 = scmp.ne.s32.totalorder %s139, %s153
      %p155 = scmp.eq.s32.totalorder %s24, 0
      %p156 = por %p154, %p155
      %s158 = sadd.s32 %s157, 1
      %p161 = scmp.eq.s32.totalorder %s18, 1
      %p162 = scmp.ne.s32.totalorder %s157, %s159
      %p163 = scmp.eq.s32.totalorder %s18, 0
      %p164 = por %p162, %p163
      %p165 = scmp.ne.s32.totalorder %s157, %s159
      %p166 = scmp.eq.s32.totalorder %s23, 1
      %p167 = por %p165, %p166
      %p168 = scmp.ne.s32.totalorder %s159, %s160
      %p169 = scmp.eq.s32.totalorder %s23, 0
      %p170 = por %p168, %p169
      %p171 = scmp.ne.s32.totalorder %s159, %s160
      %p172 = scmp.eq.s32.totalorder %s24, 1
      %p173 = por %p171, %p172
      %p175 = scmp.ne.s32.totalorder %s160, %s174
      %p176 = scmp.eq.s32.totalorder %s24, 0
      %p177 = por %p175, %p176
      %s179 = sadd.s32 %s178, 1
      %p182 = scmp.eq.s32.totalorder %s18, 1
      %p183 = scmp.ne.s32.totalorder %s178, %s180
      %p184 = scmp.eq.s32.totalorder %s18, 0
      %p185 = por %p183, %p184
      %p186 = scmp.ne.s32.totalorder %s178, %s180
      %p187 = scmp.eq.s32.totalorder %s23, 1
      %p188 = por %p186, %p187
      %p189 = scmp.ne.s32.totalorder %s180, %s181
      %p190 = scmp.eq.s32.totalorder %s23, 0
      %p191 = por %p189, %p190
      %p192 = scmp.ne.s32.totalorder %s180, %s181
      %p193 = scmp.eq.s32.totalorder %s24, 1
      %p194 = por %p192, %p193
      %p196 = scmp.ne.s32.totalorder %s181, %s195
      %p197 = scmp.eq.s32.totalorder %s24, 0
      %p198 = por %p196, %p197
      %s199 = ssub.s32 %s18, %s25
      %p200 = scmp.eq.s32.totalorder %s199, 0
      %s202 = sadd.s32 %s201, 1
      %s203 = scalar_select %p200, %s201, %s202
      %p206 = pneg %p200
      %p207 = scmp.eq.s32.totalorder %s18, 1
      %p208 = por %p206, %p207
      %p209 = scmp.ne.s32.totalorder %s201, %s204
      %p210 = scmp.eq.s32.totalorder %s18, 0
      %p211 = por %p209, %p210
      %p212 = scmp.ne.s32.totalorder %s201, %s204
      %p213 = scmp.eq.s32.totalorder %s23, 1
      %p214 = por %p212, %p213
      %p215 = scmp.ne.s32.totalorder %s204, %s205
      %p216 = scmp.eq.s32.totalorder %s23, 0
      %p217 = por %p215, %p216
      %p218 = scmp.ne.s32.totalorder %s204, %s205
      %p219 = scmp.eq.s32.totalorder %s24, 1
      %p220 = por %p218, %p219
      %p222 = scmp.ne.s32.totalorder %s205, %s221
      %p223 = scmp.eq.s32.totalorder %s24, 0
      %p224 = por %p222, %p223
      %p225 = scmp.le.s32.totalorder 1, %s18
      %p226 = scmp.lt.s32.totalorder %s18, 3
      %p227 = pnand %p225, %p226
      %p228 = pneg %p227
      // Predicated region
      $region9: #{tpu_custom_call.1} parent=5 // pred_check
        _
      $region10: #{tpu_custom_call.1} parent=5 // pred_check_branch
        %230 = sbr.rel (%p227) target = $region12
      $region11: #{tpu_custom_call.1} parent=5 // pred_region
        %s231 = ssub.s32 %s18, 1
        // Predicated region
        $region13: #{tpu_custom_call.1} parent=11 // pred_check
          %p232 = pneg %p65
        $region14: #{tpu_custom_call.1} parent=11 // pred_check_branch
          %234 = sbr.rel (%p232) target = $region16
        $region15: #{tpu_custom_call.1} parent=11 // pred_region
          %s236 = ssub.s32 192, 192
          %237 = vsyncadd [#allocation6], %s236
          %s238 = sshll.u32 [#allocation5], 4
          %s239 = int_to_ptr.vmem [resolvable:$true] %s238
          %244 = dma.hbm_to_vmem [thread:$0]  %s1, 192, %s239, [#allocation6], 64, 64, 4
        $region16: #{tpu_custom_call.1} parent=11 // pred_fallthru
          _
        // Predicated region
        $region17: #{tpu_custom_call.1} parent=11 // pred_check
          %p245 = pneg %p86
        $region18: #{tpu_custom_call.1} parent=11 // pred_check_branch
          %247 = sbr.rel (%p245) target = $region20
        $region19: #{tpu_custom_call.1} parent=11 // pred_region
          _
        $region20: #{tpu_custom_call.1} parent=11 // pred_fallthru
          _
        // Predicated region
        $region21: #{tpu_custom_call.1} parent=11 // pred_check
          %p248 = pneg %p107
        $region22: #{tpu_custom_call.1} parent=11 // pred_check_branch
          %250 = sbr.rel (%p248) target = $region24
        $region23: #{tpu_custom_call.1} parent=11 // pred_region
          _
        $region24: #{tpu_custom_call.1} parent=11 // pred_fallthru
          _
        // Predicated region
        $region25: #{tpu_custom_call.1} parent=11 // pred_check
          %p251 = pneg %p128
        $region26: #{tpu_custom_call.1} parent=11 // pred_check_branch
          %253 = sbr.rel (%p251) target = $region28
        $region27: #{tpu_custom_call.1} parent=11 // pred_region
          _
        $region28: #{tpu_custom_call.1} parent=11 // pred_fallthru
          _
        // Predicated region
        $region29: #{tpu_custom_call.1} parent=11 // pred_check
          %p254 = pneg %p149
        $region30: #{tpu_custom_call.1} parent=11 // pred_check_branch
          %256 = sbr.rel (%p254) target = $region32
        $region31: #{tpu_custom_call.1} parent=11 // pred_region
          _
        $region32: #{tpu_custom_call.1} parent=11 // pred_fallthru
          _
        // Predicated region
        $region33: #{tpu_custom_call.1} parent=11 // pred_check
          %p257 = pneg %p170
        $region34: #{tpu_custom_call.1} parent=11 // pred_check_branch
          %259 = sbr.rel (%p257) target = $region36
        $region35: #{tpu_custom_call.1} parent=11 // pred_region
          _
        $region36: #{tpu_custom_call.1} parent=11 // pred_fallthru
          _
        // Predicated region
        $region37: #{tpu_custom_call.1} parent=11 // pred_check
          %p260 = pneg %p191
        $region38: #{tpu_custom_call.1} parent=11 // pred_check_branch
          %262 = sbr.rel (%p260) target = $region40
        $region39: #{tpu_custom_call.1} parent=11 // pred_region
          _
        $region40: #{tpu_custom_call.1} parent=11 // pred_fallthru
          _
      $region12: #{tpu_custom_call.1} parent=5 // pred_fallthru
        _
      %p263 = scmp.lt.s32.totalorder %s18, 2
      // Predicated region
      $region41: #{tpu_custom_call.1} parent=5 // pred_check
        %p264 = pneg %p263
      $region42: #{tpu_custom_call.1} parent=5 // pred_check_branch
        %266 = sbr.rel (%p264) target = $region44
      $region43: #{tpu_custom_call.1} parent=5 // pred_region
        // Predicated region
        $region45: #{tpu_custom_call.1} parent=43 // pred_check
          %p267 = pneg %p38
        $region46: #{tpu_custom_call.1} parent=43 // pred_check_branch
          %269 = sbr.rel (%p267) target = $region48
        $region47: #{tpu_custom_call.1} parent=43 // pred_region
          %p270 = scmp.lt.s32.totalorder %s18, 1
          %s271 = scalar_select %p270, %s18, 1
          %s272 = smul.addr %s271, 3
          %s273 = smul.addr %s272, 4
          %s274 = scalar_lea.vmem %s0, %s273
        $region48: #{tpu_custom_call.1} parent=43 // pred_fallthru
          _
      $region44: #{tpu_custom_call.1} parent=5 // pred_fallthru
        _
      %p275 = scmp.le.s32.totalorder 1, %s18
      %p276 = scmp.lt.s32.totalorder %s18, 3
      %p277 = pnand %p275, %p276
      %p278 = pneg %p277
      // Predicated region
      $region49: #{tpu_custom_call.1} parent=5 // pred_check
        _
      $region50: #{tpu_custom_call.1} parent=5 // pred_check_branch
        %280 = sbr.rel (%p277) target = $region52
      $region51: #{tpu_custom_call.1} parent=5 // pred_region
        %s281 = ssub.s32 %s18, 1
        // Predicated region
        $region53: #{tpu_custom_call.1} parent=51 // pred_check
          %p282 = pneg %p65
        $region54: #{tpu_custom_call.1} parent=51 // pred_check_branch
          %284 = sbr.rel (%p282) target = $region56
        $region55: #{tpu_custom_call.1} parent=51 // pred_region
          %285 = dma.done [#allocation6], 192
        $region56: #{tpu_custom_call.1} parent=51 // pred_fallthru
          _
        %p286 = scmp.lt.s32.totalorder %s23, 1
        %s287 = scalar_select %p286, %s23, 1
        %s288 = smul.addr %s287, 3
        %s289 = smul.addr %s288, 4
        %s290 = scalar_lea.vmem %s0, %s289
        %p291 = pneg %p44
        %p292 = pneg %p41
        %p293 = pneg %p65
        %p294 = pneg %p62
        %p295 = pneg %p86
        %p296 = pneg %p83
        %p297 = pneg %p107
        %p298 = pneg %p104
        %p299 = pneg %p128
        %p300 = pneg %p125
        %p301 = pneg %p149
        %p302 = pneg %p146
        %p303 = pneg %p170
        %p304 = pneg %p167
        %p305 = pneg %p191
        %p306 = pneg %p188
        %p307 = pneg %p217
        %p308 = pneg %p214
        %s309 = sand.u32 %s204, 1
        %s310 = scalar_lea.sflag [#allocation7], %s309
        %s311 = sand.u32 %s204, 1
        %s312 = smul.addr %s311, 12
        %s313 = scalar_lea.vmem [#allocation8], %s312
        %p314 = scmp.lt.s32.totalorder %s23, 1
        %s315 = scalar_select %p314, %s23, 1
        %s316 = smul.addr %s315, 3
        %s317 = smul.addr %s316, 4
        %s318 = scalar_lea.vmem %s0, %s317
        %v320 = vld [vmem:[%s7] sm:$0x7]
        %v321 = vld [vmem:[%s318] sm:$0xff]
        %v322 = vld [vmem:[%s318 + $0x8] sm:$0xf]
        %v324 = vcombine.high %v321, %v321
        %326 = vst [vmem:[#allocation4] sm:$0xf] %v321
        %327 = vst [vmem:[#allocation4 + $0x8] sm:$0xf] %v324
        %vm328 = vcmask 257024
        %329 = vst.msk [vmem:[#allocation4 + $0x10] sm:$0xf] %vm328, %v322
        %v330 = vld [vmem:[%s318] sm:$0xff]
        %v331 = vld [vmem:[%s318 + $0x8] sm:$0xf]
        %v334 = vcombine.low %v330, %v330
        %v335 = vcombine.low %v331, %v331
        %336 = vrot.lane.b32.xlu0 %v334, 127
        %v337 = vpop.permute.xlu0 %336
        %338 = vrot.lane.b32.xlu0 %v330, 127
        %v339 = vpop.permute.xlu0 %338
        %340 = vrot.lane.b32.xlu0 %v335, 127
        %v341 = vpop.permute.xlu0 %340
        %vm342 = vcmask 1039360
        %v343 = vsel %vm342, %v337, %v339
        %v344 = vsel %vm342, %v339, %v341
        %348 = vst [vmem:[#allocation4] sm:$0xf0] %v343
        %349 = vst [vmem:[#allocation4 + $0x8] sm:$0xf0] %v344
        %vm350 = vcmask 261124
        %351 = vst.msk [vmem:[#allocation4 + $0x10] sm:$0xf0] %vm350, %v341
        %v352 = vld [vmem:[%s318] sm:$0xff]
        %v353 = vld [vmem:[%s318 + $0x8] sm:$0xf]
        %v356 = vcombine.high %v352, %v352
        %357 = vrot.lane.b32.xlu0 %v352, 126
        %v358 = vpop.permute.xlu0 %357
        %359 = vrot.lane.b32.xlu0 %v356, 126
        %v360 = vpop.permute.xlu0 %359
        %361 = vrot.lane.b32.xlu0 %v353, 126
        %v362 = vpop.permute.xlu0 %361
        %vm363 = vcmask 1031168
        %v364 = vsel %vm363, %v358, %v360
        %v365 = vsel %vm363, %v360, %v362
        %369 = vst [vmem:[#allocation4 + $0x18] sm:$0xf] %v364
        %370 = vst [vmem:[#allocation4 + $0x20] sm:$0xf] %v365
        %371 = vst.msk [vmem:[#allocation4 + $0x28] sm:$0xf] %vm328, %v362
        %v372 = vld [vmem:[%s318] sm:$0xff]
        %v373 = vld [vmem:[%s318 + $0x8] sm:$0xf]
        %v376 = vcombine.low %v372, %v372
        %v377 = vcombine.low %v373, %v373
        %378 = vrot.lane.b32.xlu0 %v376, 110
        %v379 = vpop.permute.xlu0 %378
        %380 = vrot.lane.b32.xlu0 %v372, 110
        %v381 = vpop.permute.xlu0 %380
        %382 = vrot.lane.b32.xlu0 %v377, 110
        %v383 = vpop.permute.xlu0 %382
        %vm384 = vcmask 900096
        %v385 = vsel %vm384, %v379, %v381
        %v386 = vsel %vm384, %v381, %v383
        %390 = vst [vmem:[#allocation4 + $0x18] sm:$0xf0] %v385
        %391 = vst [vmem:[#allocation4 + $0x20] sm:$0xf0] %v386
        %392 = vst.msk [vmem:[#allocation4 + $0x28] sm:$0xf0] %vm350, %v383
        %v393 = vld [vmem:[%s318] sm:$0xff]
        %v394 = vld [vmem:[%s318 + $0x8] sm:$0xf]
        %v397 = vcombine.high %v393, %v393
        %398 = vrot.lane.b32.xlu0 %v393, 109
        %v399 = vpop.permute.xlu0 %398
        %400 = vrot.lane.b32.xlu0 %v397, 109
        %v401 = vpop.permute.xlu0 %400
        %402 = vrot.lane.b32.xlu0 %v394, 109
        %v403 = vpop.permute.xlu0 %402
        %vm404 = vcmask 891904
        %v405 = vsel %vm404, %v399, %v401
        %v406 = vsel %vm404, %v401, %v403
        %410 = vst [vmem:[#allocation4 + $0x30] sm:$0xf] %v405
        %411 = vst [vmem:[#allocation4 + $0x38] sm:$0xf] %v406
        %412 = vst.msk [vmem:[#allocation4 + $0x40] sm:$0xf] %vm328, %v403
        %v413 = vld [vmem:[%s318] sm:$0xff]
        %v414 = vld [vmem:[%s318 + $0x8] sm:$0xf]
        %v417 = vcombine.low %v413, %v413
        %v418 = vcombine.low %v414, %v414
        %419 = vrot.lane.b32.xlu0 %v417, 108
        %v420 = vpop.permute.xlu0 %419
        %421 = vrot.lane.b32.xlu0 %v413, 108
        %v422 = vpop.permute.xlu0 %421
        %423 = vrot.lane.b32.xlu0 %v418, 108
        %v424 = vpop.permute.xlu0 %423
        %vm425 = vcmask 883712
        %v426 = vsel %vm425, %v420, %v422
        %v427 = vsel %vm425, %v422, %v424
        %431 = vst [vmem:[#allocation4 + $0x30] sm:$0xf0] %v426
        %432 = vst [vmem:[#allocation4 + $0x38] sm:$0xf0] %v427
        %433 = vst.msk [vmem:[#allocation4 + $0x40] sm:$0xf0] %vm350, %v424
        %v434 = vld [vmem:[%s318] sm:$0xff]
        %v435 = vld [vmem:[%s318 + $0x8] sm:$0xf]
        %v438 = vcombine.high %v434, %v434
        %439 = vrot.lane.b32.xlu0 %v434, 92
        %v440 = vpop.permute.xlu0 %439
        %441 = vrot.lane.b32.xlu0 %v438, 92
        %v442 = vpop.permute.xlu0 %441
        %443 = vrot.lane.b32.xlu0 %v435, 92
        %v444 = vpop.permute.xlu0 %443
        %vm445 = vcmask 752640
        %v446 = vsel %vm445, %v440, %v442
        %v447 = vsel %vm445, %v442, %v444
        %451 = vst [vmem:[#allocation4 + $0x48] sm:$0xf] %v446
        %452 = vst [vmem:[#allocation4 + $0x50] sm:$0xf] %v447
        %453 = vst.msk [vmem:[#allocation4 + $0x58] sm:$0xf] %vm328, %v444
        %v454 = vld [vmem:[%s318] sm:$0xff]
        %v455 = vld [vmem:[%s318 + $0x8] sm:$0xf]
        %v458 = vcombine.low %v454, %v454
        %v459 = vcombine.low %v455, %v455
        %460 = vrot.lane.b32.xlu0 %v458, 91
        %v461 = vpop.permute.xlu0 %460
        %462 = vrot.lane.b32.xlu0 %v454, 91
        %v463 = vpop.permute.xlu0 %462
        %464 = vrot.lane.b32.xlu0 %v459, 91
        %v465 = vpop.permute.xlu0 %464
        %vm466 = vcmask 744448
        %v467 = vsel %vm466, %v461, %v463
        %v468 = vsel %vm466, %v463, %v465
        %472 = vst [vmem:[#allocation4 + $0x48] sm:$0xf0] %v467
        %473 = vst [vmem:[#allocation4 + $0x50] sm:$0xf0] %v468
        %474 = vst.msk [vmem:[#allocation4 + $0x58] sm:$0xf0] %vm350, %v465
        %v475 = vld [vmem:[%s318] sm:$0xff]
        %v476 = vld [vmem:[%s318 + $0x8] sm:$0xf]
        %v479 = vcombine.high %v475, %v475
        %480 = vrot.lane.b32.xlu0 %v475, 90
        %v481 = vpop.permute.xlu0 %480
        %482 = vrot.lane.b32.xlu0 %v479, 90
        %v483 = vpop.permute.xlu0 %482
        %484 = vrot.lane.b32.xlu0 %v476, 90
        %v485 = vpop.permute.xlu0 %484
        %vm486 = vcmask 736256
        %v487 = vsel %vm486, %v481, %v483
        %v488 = vsel %vm486, %v483, %v485
        %492 = vst [vmem:[#allocation4 + $0x60] sm:$0xf] %v487
        %493 = vst [vmem:[#allocation4 + $0x68] sm:$0xf] %v488
        %494 = vst.msk [vmem:[#allocation4 + $0x70] sm:$0xf] %vm328, %v485
        %v495 = vld [vmem:[#allocation4] sm:$0xff]
        %v496 = vld [vmem:[#allocation4 + $0x8] sm:$0xff]
        %v497 = vld [vmem:[#allocation4 + $0x10] sm:$0xff]
        %v498 = vld [vmem:[#allocation4 + $0x18] sm:$0xff]
        %v499 = vld [vmem:[#allocation4 + $0x20] sm:$0xff]
        %v500 = vld [vmem:[#allocation4 + $0x28] sm:$0xff]
        %v501 = vld [vmem:[#allocation4 + $0x30] sm:$0xff]
        %v502 = vld [vmem:[#allocation4 + $0x38] sm:$0xff]
        %v503 = vld [vmem:[#allocation4 + $0x40] sm:$0xff]
        %v504 = vld [vmem:[#allocation4 + $0x48] sm:$0xff]
        %v505 = vld [vmem:[#allocation4 + $0x50] sm:$0xff]
        %v506 = vld [vmem:[#allocation4 + $0x58] sm:$0xff]
        %v507 = vld [vmem:[#allocation4 + $0x60] sm:$0xf]
        %v508 = vld [vmem:[#allocation4 + $0x68] sm:$0xf]
        %v509 = vld [vmem:[#allocation4 + $0x70] sm:$0xf]
        %v510 = vpack.c.bf16 %v498, %v495
        %v511 = vpack.c.bf16 %v499, %v496
        %v512 = vpack.c.bf16 %v500, %v497
        %v513 = vpack.c.bf16 %v504, %v501
        %v514 = vpack.c.bf16 %v505, %v502
        %v515 = vpack.c.bf16 %v506, %v503
        %v516 = vpack.c.bf16 %v507, %v507
        %v517 = vpack.c.bf16 %v508, %v508
        %v518 = vpack.c.bf16 %v509, %v509
        %v519 = vld [vmem:[#allocation5] sm:$0xf]
        %v520 = vld [vmem:[#allocation5 + $0x4] sm:$0xf]
        %v521 = vld [vmem:[#allocation5 + $0x8] sm:$0xf]
        %v522 = vld [vmem:[%s2] sm:$0xff]
        %v523 = vld [vmem:[%s2 + $0x8] sm:$0xff]
        %v524 = vld [vmem:[%s2 + $0x10] sm:$0xff]
        %526 = vset.pattern.permute.xlu0 0
        %527 = vperm.xlu0 %526, %v522
        %v528 = vpop.permute.xlu0 %527
        %531 = vset.pattern.permute.xlu0 0
        %532 = vperm.xlu0 %531, %v523
        %v533 = vpop.permute.xlu0 %532
        %536 = vset.pattern.permute.xlu0 0
        %537 = vperm.xlu0 %536, %v524
        %v538 = vpop.permute.xlu0 %537
        %v543 = vunpack.c.l.b16 %v519
        %v544 = vunpack.c.l.b16 %v520
        %v545 = vunpack.c.l.b16 %v521
        %v546 = vpack.c.b16 %v544, %v543
        %v547 = vpack.c.b16 %v545, %v545
        %vm548 = vcmask 293888
        %v550 = vsel %vm548, %v546, 0
        %v553 = vsel %vm548, %v547, 0
        %vm555 = vcmask 1041408
        %v557 = vsel %vm555, %v516, 0
        %v560 = vsel %vm555, %v517, 0
        %v563 = vsel %vm555, %v518, 0
        %565 = vmatprep.subr.bf16.mxu0 %v511
        %566 = vmatpush1.bf16.msra.mxu0 %v510
        %567 = vmatprep.subr.bf16.mxu0 %v514
        %568 = vmatpush1.bf16.msra.mxu0 %v513
        %569 = vmatprep.subr.bf16.mxu0 %v560
        %570 = vmatpush1.bf16.msra.mxu0 %v557
        %571 = vmatprep.subr.bf16.mxu0 0
        %572 = vmatpush1.bf16.msra.mxu0 0
        %573 = vmatprep.subr.bf16.mxu0 0
        %574 = vmatpush1.bf16.msra.mxu0 0
        %575 = vmatprep.subr.bf16.mxu0 0
        %576 = vmatpush1.bf16.msra.mxu0 0
        %577 = vmatprep.subr.bf16.mxu0 0
        %578 = vmatpush1.bf16.msra.mxu0 0
        %579 = vmatprep.subr.bf16.mxu0 0
        %580 = vmatpush1.bf16.msra.mxu0 0
        %581 = vmatprep.subr.bf16.mxu0 0
        %582 = vmatpush1.bf16.msra.mxu0 0
        %583 = vmatprep.subr.bf16.mxu0 0
        %584 = vmatpush1.bf16.msra.mxu0 0
        %585 = vmatprep.subr.bf16.mxu0 0
        %586 = vmatpush1.bf16.msra.mxu0 0
        %587 = vmatprep.subr.bf16.mxu0 0
        %588 = vmatpush1.bf16.msra.mxu0 0
        %589 = vmatprep.subr.bf16.mxu0 0
        %590 = vmatpush1.bf16.msra.mxu0 0
        %591 = vmatprep.subr.bf16.mxu0 0
        %592 = vmatpush1.bf16.msra.mxu0 0
        %593 = vmatprep.subr.bf16.mxu0 0
        %594 = vmatpush1.bf16.msra.mxu0 0
        %595 = vmatprep.subr.bf16.mxu0 0
        %596 = vmatpush1.bf16.msra.mxu0 0
        %597 = vmatprep.mubr.bf16.mxu0 0
        %598 = vmatmul.mubr.bf16.gmra.mrb[0].mxu0 %v550
        %v599 = vpop.f32.mrb[0].mxu0
        %v600 = vadd.f32 %v528, %v599
        %v601 = vpop.f32.mrb[0].mxu0
        %v602 = vadd.f32 %v528, %v601
        %v603 = vpop.f32.mrb[0].mxu0
        %v604 = vadd.f32 %v533, %v603
        %v605 = vpop.f32.mrb[0].mxu0
        %v606 = vadd.f32 %v533, %v605
        %607 = vmatprep.mubr.bf16.mxu0 0
        %608 = vmatmul.mubr.bf16.gmra.mrb[0].mxu0 %v553
        %v609 = vpop.f32.mrb[0].mxu0
        %v610 = vadd.f32 %v538, %v609
        %v611 = vpop.f32.mrb[0].mxu0
        %v612 = vadd.f32 %v538, %v611
        %v613 = vpop.f32.mrb[0].mxu0
        %v614 = vpop.f32.mrb[0].mxu0
        %615 = vdwg.mxu0
        %616 = vmatprep.subr.bf16.mxu0 0
        %617 = vmatpush1.bf16.msra.mxu0 %v512
        %618 = vmatprep.subr.bf16.mxu0 0
        %619 = vmatpush1.bf16.msra.mxu0 %v515
        %620 = vmatprep.subr.bf16.mxu0 0
        %621 = vmatpush1.bf16.msra.mxu0 %v563
        %622 = vmatprep.subr.bf16.mxu0 0
        %623 = vmatpush1.bf16.msra.mxu0 0
        %624 = vmatprep.subr.bf16.mxu0 0
        %625 = vmatpush1.bf16.msra.mxu0 0
        %626 = vmatprep.subr.bf16.mxu0 0
        %627 = vmatpush1.bf16.msra.mxu0 0
        %628 = vmatprep.subr.bf16.mxu0 0
        %629 = vmatpush1.bf16.msra.mxu0 0
        %630 = vmatprep.subr.bf16.mxu0 0
        %631 = vmatpush1.bf16.msra.mxu0 0
        %632 = vmatprep.subr.bf16.mxu0 0
        %633 = vmatpush1.bf16.msra.mxu0 0
        %634 = vmatprep.subr.bf16.mxu0 0
        %635 = vmatpush1.bf16.msra.mxu0 0
        %636 = vmatprep.subr.bf16.mxu0 0
        %637 = vmatpush1.bf16.msra.mxu0 0
        %638 = vmatprep.subr.bf16.mxu0 0
        %639 = vmatpush1.bf16.msra.mxu0 0
        %640 = vmatprep.subr.bf16.mxu0 0
        %641 = vmatpush1.bf16.msra.mxu0 0
        %642 = vmatprep.subr.bf16.mxu0 0
        %643 = vmatpush1.bf16.msra.mxu0 0
        %644 = vmatprep.subr.bf16.mxu0 0
        %645 = vmatpush1.bf16.msra.mxu0 0
        %646 = vmatprep.subr.bf16.mxu0 0
        %647 = vmatpush1.bf16.msra.mxu0 0
        %648 = vmatprep.mubr.bf16.mxu0 0
        %649 = vmatmul.mubr.bf16.gmra.mrb[0].mxu0 %v550
        %v650 = vpop.f32.mrb[0].mxu0
        %v651 = vadd.f32 %v528, %v650
        %v652 = vpop.f32.mrb[0].mxu0
        %v653 = vpop.f32.mrb[0].mxu0
        %v654 = vadd.f32 %v533, %v653
        %v655 = vpop.f32.mrb[0].mxu0
        %656 = vmatprep.mubr.bf16.mxu0 0
        %657 = vmatmul.mubr.bf16.gmra.mrb[0].mxu0 %v553
        %v658 = vpop.f32.mrb[0].mxu0
        %v659 = vadd.f32 %v538, %v658
        %v660 = vpop.f32.mrb[0].mxu0
        %v661 = vpop.f32.mrb[0].mxu0
        %v662 = vpop.f32.mrb[0].mxu0
        %663 = vdwg.mxu0
        %664 = vst [vmem:[#allocation2] sm:$0xff] 0.0
        %665 = vst [vmem:[#allocation2 + $0x8] sm:$0xff] 0.0
        %vm666 = vcmask 621568
        %667 = vst.msk [vmem:[#allocation2 + $0x10] sm:$0xff] %vm666, 0.0
        %668 = vst [vmem:[#allocation2 + $0x18] sm:$0xff] 0.0
        %669 = vst [vmem:[#allocation2 + $0x20] sm:$0xff] 0.0
        %670 = vst.msk [vmem:[#allocation2 + $0x28] sm:$0xff] %vm666, 0.0
        %671 = vst [vmem:[#allocation2 + $0x30] sm:$0xff] 0.0
        %672 = vst [vmem:[#allocation2 + $0x38] sm:$0xff] 0.0
        %673 = vst.msk [vmem:[#allocation2 + $0x40] sm:$0xff] %vm666, 0.0
        %v675 = vlaneseq
        %v676 = vshrl.u32 %v675, 7
        %v677 = vsub.s32 0, %v676
        %v678 = vrot.slane %v320, %v677
        %v679 = vlaneseq
        %v680 = vshrl.u32 %v679, 7
        %v681 = vsub.s32 1, %v680
        %v682 = vrot.slane %v320, %v681
        %v683 = vlaneseq
        %v684 = vshrl.u32 %v683, 7
        %v685 = vsub.s32 2, %v684
        %v686 = vrot.slane %v320, %v685
        %v690 = vmul.f32 %v600, %v678
        %v691 = vmul.f32 %v602, %v682
        %v692 = vmul.f32 %v651, %v686
        %v693 = vmul.f32 %v604, %v678
        %v694 = vmul.f32 %v606, %v682
        %v695 = vmul.f32 %v654, %v686
        %v696 = vmul.f32 %v610, %v678
        %v697 = vmul.f32 %v612, %v682
        %v698 = vmul.f32 %v659, %v686
        %708 = vrot.lane.b32.xlu0 %v690, 19
        %v709 = vpop.permute.xlu0 %708
        %710 = vrot.lane.b32.xlu0 %v691, 19
        %v711 = vpop.permute.xlu0 %710
        %712 = vrot.lane.b32.xlu0 %v692, 19
        %v713 = vpop.permute.xlu0 %712
        %714 = vrot.lane.b32.xlu0 %v693, 19
        %v715 = vpop.permute.xlu0 %714
        %716 = vrot.lane.b32.xlu0 %v694, 19
        %v717 = vpop.permute.xlu0 %716
        %718 = vrot.lane.b32.xlu0 %v695, 19
        %v719 = vpop.permute.xlu0 %718
        %720 = vrot.lane.b32.xlu0 %v696, 19
        %v721 = vpop.permute.xlu0 %720
        %722 = vrot.lane.b32.xlu0 %v697, 19
        %v723 = vpop.permute.xlu0 %722
        %724 = vrot.lane.b32.xlu0 %v698, 19
        %v725 = vpop.permute.xlu0 %724
        %vm726 = vcmask 154624
        %v727 = vsel %vm726, %v709, %v711
        %v728 = vsel %vm726, %v711, %v713
        %v729 = vsel %vm726, %v715, %v717
        %v730 = vsel %vm726, %v717, %v719
        %v731 = vsel %vm726, %v721, %v723
        %v732 = vsel %vm726, %v723, %v725
        %vm742 = vcmask 1047704
        %743 = vst.msk [vmem:[#allocation2] sm:$0xff] %vm742, %v709
        %744 = vst [vmem:[#allocation2 + $0x8] sm:$0xff] %v727
        %vm745 = vcmask 416768
        %746 = vst.msk [vmem:[#allocation2 + $0x10] sm:$0xff] %vm745, %v728
        %747 = vst.msk [vmem:[#allocation2 + $0x18] sm:$0xff] %vm742, %v715
        %748 = vst [vmem:[#allocation2 + $0x20] sm:$0xff] %v729
        %749 = vst.msk [vmem:[#allocation2 + $0x28] sm:$0xff] %vm745, %v730
        %750 = vst.msk [vmem:[#allocation2 + $0x30] sm:$0xff] %vm742, %v721
        %751 = vst [vmem:[#allocation2 + $0x38] sm:$0xff] %v731
        %752 = vst.msk [vmem:[#allocation2 + $0x40] sm:$0xff] %vm745, %v732
        %v753 = vld [vmem:[#allocation2] sm:$0xff]
        %v754 = vld [vmem:[#allocation2 + $0x8] sm:$0xff]
        %v755 = vld [vmem:[#allocation2 + $0x10] sm:$0xff]
        %v756 = vld [vmem:[#allocation2 + $0x18] sm:$0xff]
        %v757 = vld [vmem:[#allocation2 + $0x20] sm:$0xff]
        %v758 = vld [vmem:[#allocation2 + $0x28] sm:$0xff]
        %v759 = vld [vmem:[#allocation2 + $0x30] sm:$0xff]
        %v760 = vld [vmem:[#allocation2 + $0x38] sm:$0xff]
        %v761 = vld [vmem:[#allocation2 + $0x40] sm:$0xff]
        %762 = vst [vmem:[#allocation4] sm:$0xff] %v753
        %763 = vst [vmem:[#allocation4 + $0x8] sm:$0xff] %v754
        %vm764 = vcmask 261120
        %765 = vst.msk [vmem:[#allocation4 + $0x10] sm:$0xff] %vm764, %v755
        %766 = vst [vmem:[#allocation4 + $0x18] sm:$0xff] %v756
        %767 = vst [vmem:[#allocation4 + $0x20] sm:$0xff] %v757
        %768 = vst.msk [vmem:[#allocation4 + $0x28] sm:$0xff] %vm764, %v758
        %769 = vst [vmem:[#allocation4 + $0x30] sm:$0xff] %v759
        %770 = vst [vmem:[#allocation4 + $0x38] sm:$0xff] %v760
        %771 = vst.msk [vmem:[#allocation4 + $0x40] sm:$0xff] %vm764, %v761
        %v772 = vld [vmem:[#allocation2] sm:$0xff]
        %v773 = vld [vmem:[#allocation2 + $0x8] sm:$0xff]
        %v774 = vld [vmem:[#allocation2 + $0x10] sm:$0xff]
        %v775 = vld [vmem:[#allocation2 + $0x18] sm:$0xff]
        %v776 = vld [vmem:[#allocation2 + $0x20] sm:$0xff]
        %v777 = vld [vmem:[#allocation2 + $0x28] sm:$0xff]
        %v778 = vld [vmem:[#allocation2 + $0x30] sm:$0xff]
        %v779 = vld [vmem:[#allocation2 + $0x38] sm:$0xff]
        %v780 = vld [vmem:[#allocation2 + $0x40] sm:$0xff]
        %790 = vrot.lane.b32.xlu0 %v772, 127
        %v791 = vpop.permute.xlu0 %790
        %792 = vrot.lane.b32.xlu0 %v773, 127
        %v793 = vpop.permute.xlu0 %792
        %794 = vrot.lane.b32.xlu0 %v774, 127
        %v795 = vpop.permute.xlu0 %794
        %796 = vrot.lane.b32.xlu0 %v775, 127
        %v797 = vpop.permute.xlu0 %796
        %798 = vrot.lane.b32.xlu0 %v776, 127
        %v799 = vpop.permute.xlu0 %798
        %800 = vrot.lane.b32.xlu0 %v777, 127
        %v801 = vpop.permute.xlu0 %800
        %802 = vrot.lane.b32.xlu0 %v778, 127
        %v803 = vpop.permute.xlu0 %802
        %804 = vrot.lane.b32.xlu0 %v779, 127
        %v805 = vpop.permute.xlu0 %804
        %806 = vrot.lane.b32.xlu0 %v780, 127
        %v807 = vpop.permute.xlu0 %806
        %v808 = vsel %vm342, %v791, %v793
        %v809 = vsel %vm342, %v793, %v795
        %v810 = vsel %vm342, %v797, %v799
        %v811 = vsel %vm342, %v799, %v801
        %v812 = vsel %vm342, %v803, %v805
        %v813 = vsel %vm342, %v805, %v807
        %823 = vst [vmem:[#allocation4 + $0x48] sm:$0xff] %v808
        %824 = vst [vmem:[#allocation4 + $0x50] sm:$0xff] %v809
        %825 = vst.msk [vmem:[#allocation4 + $0x58] sm:$0xff] %vm764, %v795
        %826 = vst [vmem:[#allocation4 + $0x60] sm:$0xff] %v810
        %827 = vst [vmem:[#allocation4 + $0x68] sm:$0xff] %v811
        %828 = vst.msk [vmem:[#allocation4 + $0x70] sm:$0xff] %vm764, %v801
        %829 = vst [vmem:[#allocation4 + $0x78] sm:$0xff] %v812
        %830 = vst [vmem:[#allocation4 + $0x80] sm:$0xff] %v813
        %831 = vst.msk [vmem:[#allocation4 + $0x88] sm:$0xff] %vm764, %v807
        %v832 = vld [vmem:[#allocation2] sm:$0xff]
        %v833 = vld [vmem:[#allocation2 + $0x8] sm:$0xff]
        %v834 = vld [vmem:[#allocation2 + $0x10] sm:$0xff]
        %v835 = vld [vmem:[#allocation2 + $0x18] sm:$0xff]
        %v836 = vld [vmem:[#allocation2 + $0x20] sm:$0xff]
        %v837 = vld [vmem:[#allocation2 + $0x28] sm:$0xff]
        %v838 = vld [vmem:[#allocation2 + $0x30] sm:$0xff]
        %v839 = vld [vmem:[#allocation2 + $0x38] sm:$0xff]
        %v840 = vld [vmem:[#allocation2 + $0x40] sm:$0xff]
        %850 = vrot.lane.b32.xlu0 %v832, 126
        %v851 = vpop.permute.xlu0 %850
        %852 = vrot.lane.b32.xlu0 %v833, 126
        %v853 = vpop.permute.xlu0 %852
        %854 = vrot.lane.b32.xlu0 %v834, 126
        %v855 = vpop.permute.xlu0 %854
        %856 = vrot.lane.b32.xlu0 %v835, 126
        %v857 = vpop.permute.xlu0 %856
        %858 = vrot.lane.b32.xlu0 %v836, 126
        %v859 = vpop.permute.xlu0 %858
        %860 = vrot.lane.b32.xlu0 %v837, 126
        %v861 = vpop.permute.xlu0 %860
        %862 = vrot.lane.b32.xlu0 %v838, 126
        %v863 = vpop.permute.xlu0 %862
        %864 = vrot.lane.b32.xlu0 %v839, 126
        %v865 = vpop.permute.xlu0 %864
        %866 = vrot.lane.b32.xlu0 %v840, 126
        %v867 = vpop.permute.xlu0 %866
        %v868 = vsel %vm363, %v851, %v853
        %v869 = vsel %vm363, %v853, %v855
        %v870 = vsel %vm363, %v857, %v859
        %v871 = vsel %vm363, %v859, %v861
        %v872 = vsel %vm363, %v863, %v865
        %v873 = vsel %vm363, %v865, %v867
        %883 = vst [vmem:[#allocation4 + $0x90] sm:$0xff] %v868
        %884 = vst [vmem:[#allocation4 + $0x98] sm:$0xff] %v869
        %885 = vst.msk [vmem:[#allocation4 + $0xa0] sm:$0xff] %vm764, %v855
        %886 = vst [vmem:[#allocation4 + $0xa8] sm:$0xff] %v870
        %887 = vst [vmem:[#allocation4 + $0xb0] sm:$0xff] %v871
        %888 = vst.msk [vmem:[#allocation4 + $0xb8] sm:$0xff] %vm764, %v861
        %889 = vst [vmem:[#allocation4 + $0xc0] sm:$0xff] %v872
        %890 = vst [vmem:[#allocation4 + $0xc8] sm:$0xff] %v873
        %891 = vst.msk [vmem:[#allocation4 + $0xd0] sm:$0xff] %vm764, %v867
        %v892 = vld [vmem:[#allocation2] sm:$0xff]
        %v893 = vld [vmem:[#allocation2 + $0x8] sm:$0xff]
        %v894 = vld [vmem:[#allocation2 + $0x10] sm:$0xff]
        %v895 = vld [vmem:[#allocation2 + $0x18] sm:$0xff]
        %v896 = vld [vmem:[#allocation2 + $0x20] sm:$0xff]
        %v897 = vld [vmem:[#allocation2 + $0x28] sm:$0xff]
        %v898 = vld [vmem:[#allocation2 + $0x30] sm:$0xff]
        %v899 = vld [vmem:[#allocation2 + $0x38] sm:$0xff]
        %v900 = vld [vmem:[#allocation2 + $0x40] sm:$0xff]
        %910 = vrot.lane.b32.xlu0 %v892, 110
        %v911 = vpop.permute.xlu0 %910
        %912 = vrot.lane.b32.xlu0 %v893, 110
        %v913 = vpop.permute.xlu0 %912
        %914 = vrot.lane.b32.xlu0 %v894, 110
        %v915 = vpop.permute.xlu0 %914
        %916 = vrot.lane.b32.xlu0 %v895, 110
        %v917 = vpop.permute.xlu0 %916
        %918 = vrot.lane.b32.xlu0 %v896, 110
        %v919 = vpop.permute.xlu0 %918
        %920 = vrot.lane.b32.xlu0 %v897, 110
        %v921 = vpop.permute.xlu0 %920
        %922 = vrot.lane.b32.xlu0 %v898, 110
        %v923 = vpop.permute.xlu0 %922
        %924 = vrot.lane.b32.xlu0 %v899, 110
        %v925 = vpop.permute.xlu0 %924
        %926 = vrot.lane.b32.xlu0 %v900, 110
        %v927 = vpop.permute.xlu0 %926
        %v928 = vsel %vm384, %v911, %v913
        %v929 = vsel %vm384, %v913, %v915
        %v930 = vsel %vm384, %v917, %v919
        %v931 = vsel %vm384, %v919, %v921
        %v932 = vsel %vm384, %v923, %v925
        %v933 = vsel %vm384, %v925, %v927
        %943 = vst [vmem:[#allocation4 + $0xd8] sm:$0xff] %v928
        %944 = vst [vmem:[#allocation4 + $0xe0] sm:$0xff] %v929
        %945 = vst.msk [vmem:[#allocation4 + $0xe8] sm:$0xff] %vm764, %v915
        %946 = vst [vmem:[#allocation4 + $0xf0] sm:$0xff] %v930
        %947 = vst [vmem:[#allocation4 + $0xf8] sm:$0xff] %v931
        %948 = vst.msk [vmem:[#allocation4 + $0x100] sm:$0xff] %vm764, %v921
        %949 = vst [vmem:[#allocation4 + $0x108] sm:$0xff] %v932
        %950 = vst [vmem:[#allocation4 + $0x110] sm:$0xff] %v933
        %951 = vst.msk [vmem:[#allocation4 + $0x118] sm:$0xff] %vm764, %v927
        %v952 = vld [vmem:[#allocation2] sm:$0xff]
        %v953 = vld [vmem:[#allocation2 + $0x8] sm:$0xff]
        %v954 = vld [vmem:[#allocation2 + $0x10] sm:$0xff]
        %v955 = vld [vmem:[#allocation2 + $0x18] sm:$0xff]
        %v956 = vld [vmem:[#allocation2 + $0x20] sm:$0xff]
        %v957 = vld [vmem:[#allocation2 + $0x28] sm:$0xff]
        %v958 = vld [vmem:[#allocation2 + $0x30] sm:$0xff]
        %v959 = vld [vmem:[#allocation2 + $0x38] sm:$0xff]
        %v960 = vld [vmem:[#allocation2 + $0x40] sm:$0xff]
        %970 = vrot.lane.b32.xlu0 %v952, 109
        %v971 = vpop.permute.xlu0 %970
        %972 = vrot.lane.b32.xlu0 %v953, 109
        %v973 = vpop.permute.xlu0 %972
        %974 = vrot.lane.b32.xlu0 %v954, 109
        %v975 = vpop.permute.xlu0 %974
        %976 = vrot.lane.b32.xlu0 %v955, 109
        %v977 = vpop.permute.xlu0 %976
        %978 = vrot.lane.b32.xlu0 %v956, 109
        %v979 = vpop.permute.xlu0 %978
        %980 = vrot.lane.b32.xlu0 %v957, 109
        %v981 = vpop.permute.xlu0 %980
        %982 = vrot.lane.b32.xlu0 %v958, 109
        %v983 = vpop.permute.xlu0 %982
        %984 = vrot.lane.b32.xlu0 %v959, 109
        %v985 = vpop.permute.xlu0 %984
        %986 = vrot.lane.b32.xlu0 %v960, 109
        %v987 = vpop.permute.xlu0 %986
        %v988 = vsel %vm404, %v971, %v973
        %v989 = vsel %vm404, %v973, %v975
        %v990 = vsel %vm404, %v977, %v979
        %v991 = vsel %vm404, %v979, %v981
        %v992 = vsel %vm404, %v983, %v985
        %v993 = vsel %vm404, %v985, %v987
        %1003 = vst [vmem:[#allocation4 + $0x120] sm:$0xff] %v988
        %1004 = vst [vmem:[#allocation4 + $0x128] sm:$0xff] %v989
        %1005 = vst.msk [vmem:[#allocation4 + $0x130] sm:$0xff] %vm764, %v975
        %1006 = vst [vmem:[#allocation4 + $0x138] sm:$0xff] %v990
        %1007 = vst [vmem:[#allocation4 + $0x140] sm:$0xff] %v991
        %1008 = vst.msk [vmem:[#allocation4 + $0x148] sm:$0xff] %vm764, %v981
        %1009 = vst [vmem:[#allocation4 + $0x150] sm:$0xff] %v992
        %1010 = vst [vmem:[#allocation4 + $0x158] sm:$0xff] %v993
        %1011 = vst.msk [vmem:[#allocation4 + $0x160] sm:$0xff] %vm764, %v987
        %v1012 = vld [vmem:[#allocation2] sm:$0xff]
        %v1013 = vld [vmem:[#allocation2 + $0x8] sm:$0xff]
        %v1014 = vld [vmem:[#allocation2 + $0x10] sm:$0xff]
        %v1015 = vld [vmem:[#allocation2 + $0x18] sm:$0xff]
        %v1016 = vld [vmem:[#allocation2 + $0x20] sm:$0xff]
        %v1017 = vld [vmem:[#allocation2 + $0x28] sm:$0xff]
        %v1018 = vld [vmem:[#allocation2 + $0x30] sm:$0xff]
        %v1019 = vld [vmem:[#allocation2 + $0x38] sm:$0xff]
        %v1020 = vld [vmem:[#allocation2 + $0x40] sm:$0xff]
        %1030 = vrot.lane.b32.xlu0 %v1012, 108
        %v1031 = vpop.permute.xlu0 %1030
        %1032 = vrot.lane.b32.xlu0 %v1013, 108
        %v1033 = vpop.permute.xlu0 %1032
        %1034 = vrot.lane.b32.xlu0 %v1014, 108
        %v1035 = vpop.permute.xlu0 %1034
        %1036 = vrot.lane.b32.xlu0 %v1015, 108
        %v1037 = vpop.permute.xlu0 %1036
        %1038 = vrot.lane.b32.xlu0 %v1016, 108
        %v1039 = vpop.permute.xlu0 %1038
        %1040 = vrot.lane.b32.xlu0 %v1017, 108
        %v1041 = vpop.permute.xlu0 %1040
        %1042 = vrot.lane.b32.xlu0 %v1018, 108
        %v1043 = vpop.permute.xlu0 %1042
        %1044 = vrot.lane.b32.xlu0 %v1019, 108
        %v1045 = vpop.permute.xlu0 %1044
        %1046 = vrot.lane.b32.xlu0 %v1020, 108
        %v1047 = vpop.permute.xlu0 %1046
        %v1048 = vsel %vm425, %v1031, %v1033
        %v1049 = vsel %vm425, %v1033, %v1035
        %v1050 = vsel %vm425, %v1037, %v1039
        %v1051 = vsel %vm425, %v1039, %v1041
        %v1052 = vsel %vm425, %v1043, %v1045
        %v1053 = vsel %vm425, %v1045, %v1047
        %1063 = vst [vmem:[#allocation4 + $0x168] sm:$0xff] %v1048
        %1064 = vst [vmem:[#allocation4 + $0x170] sm:$0xff] %v1049
        %1065 = vst.msk [vmem:[#allocation4 + $0x178] sm:$0xff] %vm764, %v1035
        %1066 = vst [vmem:[#allocation4 + $0x180] sm:$0xff] %v1050
        %1067 = vst [vmem:[#allocation4 + $0x188] sm:$0xff] %v1051
        %1068 = vst.msk [vmem:[#allocation4 + $0x190] sm:$0xff] %vm764, %v1041
        %1069 = vst [vmem:[#allocation4 + $0x198] sm:$0xff] %v1052
        %1070 = vst [vmem:[#allocation4 + $0x1a0] sm:$0xff] %v1053
        %1071 = vst.msk [vmem:[#allocation4 + $0x1a8] sm:$0xff] %vm764, %v1047
        %v1072 = vld [vmem:[#allocation2] sm:$0xff]
        %v1073 = vld [vmem:[#allocation2 + $0x8] sm:$0xff]
        %v1074 = vld [vmem:[#allocation2 + $0x10] sm:$0xff]
        %v1075 = vld [vmem:[#allocation2 + $0x18] sm:$0xff]
        %v1076 = vld [vmem:[#allocation2 + $0x20] sm:$0xff]
        %v1077 = vld [vmem:[#allocation2 + $0x28] sm:$0xff]
        %v1078 = vld [vmem:[#allocation2 + $0x30] sm:$0xff]
        %v1079 = vld [vmem:[#allocation2 + $0x38] sm:$0xff]
        %v1080 = vld [vmem:[#allocation2 + $0x40] sm:$0xff]
        %1090 = vrot.lane.b32.xlu0 %v1072, 92
        %v1091 = vpop.permute.xlu0 %1090
        %1092 = vrot.lane.b32.xlu0 %v1073, 92
        %v1093 = vpop.permute.xlu0 %1092
        %1094 = vrot.lane.b32.xlu0 %v1074, 92
        %v1095 = vpop.permute.xlu0 %1094
        %1096 = vrot.lane.b32.xlu0 %v1075, 92
        %v1097 = vpop.permute.xlu0 %1096
        %1098 = vrot.lane.b32.xlu0 %v1076, 92
        %v1099 = vpop.permute.xlu0 %1098
        %1100 = vrot.lane.b32.xlu0 %v1077, 92
        %v1101 = vpop.permute.xlu0 %1100
        %1102 = vrot.lane.b32.xlu0 %v1078, 92
        %v1103 = vpop.permute.xlu0 %1102
        %1104 = vrot.lane.b32.xlu0 %v1079, 92
        %v1105 = vpop.permute.xlu0 %1104
        %1106 = vrot.lane.b32.xlu0 %v1080, 92
        %v1107 = vpop.permute.xlu0 %1106
        %v1108 = vsel %vm445, %v1091, %v1093
        %v1109 = vsel %vm445, %v1093, %v1095
        %v1110 = vsel %vm445, %v1097, %v1099
        %v1111 = vsel %vm445, %v1099, %v1101
        %v1112 = vsel %vm445, %v1103, %v1105
        %v1113 = vsel %vm445, %v1105, %v1107
        %1123 = vst [vmem:[#allocation4 + $0x1b0] sm:$0xff] %v1108
        %1124 = vst [vmem:[#allocation4 + $0x1b8] sm:$0xff] %v1109
        %1125 = vst.msk [vmem:[#allocation4 + $0x1c0] sm:$0xff] %vm764, %v1095
        %1126 = vst [vmem:[#allocation4 + $0x1c8] sm:$0xff] %v1110
        %1127 = vst [vmem:[#allocation4 + $0x1d0] sm:$0xff] %v1111
        %1128 = vst.msk [vmem:[#allocation4 + $0x1d8] sm:$0xff] %vm764, %v1101
        %1129 = vst [vmem:[#allocation4 + $0x1e0] sm:$0xff] %v1112
        %1130 = vst [vmem:[#allocation4 + $0x1e8] sm:$0xff] %v1113
        %1131 = vst.msk [vmem:[#allocation4 + $0x1f0] sm:$0xff] %vm764, %v1107
        %v1132 = vld [vmem:[#allocation2] sm:$0xff]
        %v1133 = vld [vmem:[#allocation2 + $0x8] sm:$0xff]
        %v1134 = vld [vmem:[#allocation2 + $0x10] sm:$0xff]
        %v1135 = vld [vmem:[#allocation2 + $0x18] sm:$0xff]
        %v1136 = vld [vmem:[#allocation2 + $0x20] sm:$0xff]
        %v1137 = vld [vmem:[#allocation2 + $0x28] sm:$0xff]
        %v1138 = vld [vmem:[#allocation2 + $0x30] sm:$0xff]
        %v1139 = vld [vmem:[#allocation2 + $0x38] sm:$0xff]
        %v1140 = vld [vmem:[#allocation2 + $0x40] sm:$0xff]
        %1150 = vrot.lane.b32.xlu0 %v1132, 91
        %v1151 = vpop.permute.xlu0 %1150
        %1152 = vrot.lane.b32.xlu0 %v1133, 91
        %v1153 = vpop.permute.xlu0 %1152
        %1154 = vrot.lane.b32.xlu0 %v1134, 91
        %v1155 = vpop.permute.xlu0 %1154
        %1156 = vrot.lane.b32.xlu0 %v1135, 91
        %v1157 = vpop.permute.xlu0 %1156
        %1158 = vrot.lane.b32.xlu0 %v1136, 91
        %v1159 = vpop.permute.xlu0 %1158
        %1160 = vrot.lane.b32.xlu0 %v1137, 91
        %v1161 = vpop.permute.xlu0 %1160
        %1162 = vrot.lane.b32.xlu0 %v1138, 91
        %v1163 = vpop.permute.xlu0 %1162
        %1164 = vrot.lane.b32.xlu0 %v1139, 91
        %v1165 = vpop.permute.xlu0 %1164
        %1166 = vrot.lane.b32.xlu0 %v1140, 91
        %v1167 = vpop.permute.xlu0 %1166
        %v1168 = vsel %vm466, %v1151, %v1153
        %v1169 = vsel %vm466, %v1153, %v1155
        %v1170 = vsel %vm466, %v1157, %v1159
        %v1171 = vsel %vm466, %v1159, %v1161
        %v1172 = vsel %vm466, %v1163, %v1165
        %v1173 = vsel %vm466, %v1165, %v1167
        %1183 = vst [vmem:[#allocation4 + $0x1f8] sm:$0xff] %v1168
        %1184 = vst [vmem:[#allocation4 + $0x200] sm:$0xff] %v1169
        %1185 = vst.msk [vmem:[#allocation4 + $0x208] sm:$0xff] %vm764, %v1155
        %1186 = vst [vmem:[#allocation4 + $0x210] sm:$0xff] %v1170
        %1187 = vst [vmem:[#allocation4 + $0x218] sm:$0xff] %v1171
        %1188 = vst.msk [vmem:[#allocation4 + $0x220] sm:$0xff] %vm764, %v1161
        %1189 = vst [vmem:[#allocation4 + $0x228] sm:$0xff] %v1172
        %1190 = vst [vmem:[#allocation4 + $0x230] sm:$0xff] %v1173
        %1191 = vst.msk [vmem:[#allocation4 + $0x238] sm:$0xff] %vm764, %v1167
        %v1192 = vld [vmem:[#allocation2] sm:$0xff]
        %v1193 = vld [vmem:[#allocation2 + $0x8] sm:$0xff]
        %v1194 = vld [vmem:[#allocation2 + $0x10] sm:$0xff]
        %v1195 = vld [vmem:[#allocation2 + $0x18] sm:$0xff]
        %v1196 = vld [vmem:[#allocation2 + $0x20] sm:$0xff]
        %v1197 = vld [vmem:[#allocation2 + $0x28] sm:$0xff]
        %v1198 = vld [vmem:[#allocation2 + $0x30] sm:$0xff]
        %v1199 = vld [vmem:[#allocation2 + $0x38] sm:$0xff]
        %v1200 = vld [vmem:[#allocation2 + $0x40] sm:$0xff]
        %1210 = vrot.lane.b32.xlu0 %v1192, 90
        %v1211 = vpop.permute.xlu0 %1210
        %1212 = vrot.lane.b32.xlu0 %v1193, 90
        %v1213 = vpop.permute.xlu0 %1212
        %1214 = vrot.lane.b32.xlu0 %v1194, 90
        %v1215 = vpop.permute.xlu0 %1214
        %1216 = vrot.lane.b32.xlu0 %v1195, 90
        %v1217 = vpop.permute.xlu0 %1216
        %1218 = vrot.lane.b32.xlu0 %v1196, 90
        %v1219 = vpop.permute.xlu0 %1218
        %1220 = vrot.lane.b32.xlu0 %v1197, 90
        %v1221 = vpop.permute.xlu0 %1220
        %1222 = vrot.lane.b32.xlu0 %v1198, 90
        %v1223 = vpop.permute.xlu0 %1222
        %1224 = vrot.lane.b32.xlu0 %v1199, 90
        %v1225 = vpop.permute.xlu0 %1224
        %1226 = vrot.lane.b32.xlu0 %v1200, 90
        %v1227 = vpop.permute.xlu0 %1226
        %v1228 = vsel %vm486, %v1211, %v1213
        %v1229 = vsel %vm486, %v1213, %v1215
        %v1230 = vsel %vm486, %v1217, %v1219
        %v1231 = vsel %vm486, %v1219, %v1221
        %v1232 = vsel %vm486, %v1223, %v1225
        %v1233 = vsel %vm486, %v1225, %v1227
        %1243 = vst [vmem:[#allocation4 + $0x240] sm:$0xff] %v1228
        %1244 = vst [vmem:[#allocation4 + $0x248] sm:$0xff] %v1229
        %1245 = vst.msk [vmem:[#allocation4 + $0x250] sm:$0xff] %vm764, %v1215
        %1246 = vst [vmem:[#allocation4 + $0x258] sm:$0xff] %v1230
        %1247 = vst [vmem:[#allocation4 + $0x260] sm:$0xff] %v1231
        %1248 = vst.msk [vmem:[#allocation4 + $0x268] sm:$0xff] %vm764, %v1221
        %1249 = vst [vmem:[#allocation4 + $0x270] sm:$0xff] %v1232
        %1250 = vst [vmem:[#allocation4 + $0x278] sm:$0xff] %v1233
        %1251 = vst.msk [vmem:[#allocation4 + $0x280] sm:$0xff] %vm764, %v1227
        %v1252 = vld [vmem:[#allocation4] sm:$0xff]
        %v1253 = vld [vmem:[#allocation4 + $0x8] sm:$0xff]
        %v1254 = vld [vmem:[#allocation4 + $0x10] sm:$0xff]
        %v1255 = vld [vmem:[#allocation4 + $0x18] sm:$0xff]
        %v1256 = vld [vmem:[#allocation4 + $0x20] sm:$0xff]
        %v1257 = vld [vmem:[#allocation4 + $0x28] sm:$0xff]
        %v1258 = vld [vmem:[#allocation4 + $0x30] sm:$0xff]
        %v1259 = vld [vmem:[#allocation4 + $0x38] sm:$0xff]
        %v1260 = vld [vmem:[#allocation4 + $0x40] sm:$0xff]
        %v1261 = vld [vmem:[#allocation4 + $0x48] sm:$0xff]
        %v1262 = vld [vmem:[#allocation4 + $0x50] sm:$0xff]
        %v1263 = vld [vmem:[#allocation4 + $0x58] sm:$0xff]
        %v1264 = vld [vmem:[#allocation4 + $0x60] sm:$0xff]
        %v1265 = vld [vmem:[#allocation4 + $0x68] sm:$0xff]
        %v1266 = vld [vmem:[#allocation4 + $0x70] sm:$0xff]
        %v1267 = vld [vmem:[#allocation4 + $0x78] sm:$0xff]
        %v1268 = vld [vmem:[#allocation4 + $0x80] sm:$0xff]
        %v1269 = vld [vmem:[#allocation4 + $0x88] sm:$0xff]
        %v1270 = vld [vmem:[#allocation4 + $0x90] sm:$0xff]
        %v1271 = vld [vmem:[#allocation4 + $0x98] sm:$0xff]
        %v1272 = vld [vmem:[#allocation4 + $0xa0] sm:$0xff]
        %v1273 = vld [vmem:[#allocation4 + $0xa8] sm:$0xff]
        %v1274 = vld [vmem:[#allocation4 + $0xb0] sm:$0xff]
        %v1275 = vld [vmem:[#allocation4 + $0xb8] sm:$0xff]
        %v1276 = vld [vmem:[#allocation4 + $0xc0] sm:$0xff]
        %v1277 = vld [vmem:[#allocation4 + $0xc8] sm:$0xff]
        %v1278 = vld [vmem:[#allocation4 + $0xd0] sm:$0xff]
        %v1279 = vld [vmem:[#allocation4 + $0xd8] sm:$0xff]
        %v1280 = vld [vmem:[#allocation4 + $0xe0] sm:$0xff]
        %v1281 = vld [vmem:[#allocation4 + $0xe8] sm:$0xff]
        %v1282 = vld [vmem:[#allocation4 + $0xf0] sm:$0xff]
        %v1283 = vld [vmem:[#allocation4 + $0xf8] sm:$0xff]
        %v1284 = vld [vmem:[#allocation4 + $0x100] sm:$0xff]
        %v1285 = vld [vmem:[#allocation4 + $0x108] sm:$0xff]
        %v1286 = vld [vmem:[#allocation4 + $0x110] sm:$0xff]
        %v1287 = vld [vmem:[#allocation4 + $0x118] sm:$0xff]
        %v1288 = vld [vmem:[#allocation4 + $0x120] sm:$0xff]
        %v1289 = vld [vmem:[#allocation4 + $0x128] sm:$0xff]
        %v1290 = vld [vmem:[#allocation4 + $0x130] sm:$0xff]
        %v1291 = vld [vmem:[#allocation4 + $0x138] sm:$0xff]
        %v1292 = vld [vmem:[#allocation4 + $0x140] sm:$0xff]
        %v1293 = vld [vmem:[#allocation4 + $0x148] sm:$0xff]
        %v1294 = vld [vmem:[#allocation4 + $0x150] sm:$0xff]
        %v1295 = vld [vmem:[#allocation4 + $0x158] sm:$0xff]
        %v1296 = vld [vmem:[#allocation4 + $0x160] sm:$0xff]
        %v1297 = vld [vmem:[#allocation4 + $0x168] sm:$0xff]
        %v1298 = vld [vmem:[#allocation4 + $0x170] sm:$0xff]
        %v1299 = vld [vmem:[#allocation4 + $0x178] sm:$0xff]
        %v1300 = vld [vmem:[#allocation4 + $0x180] sm:$0xff]
        %v1301 = vld [vmem:[#allocation4 + $0x188] sm:$0xff]
        %v1302 = vld [vmem:[#allocation4 + $0x190] sm:$0xff]
        %v1303 = vld [vmem:[#allocation4 + $0x198] sm:$0xff]
        %v1304 = vld [vmem:[#allocation4 + $0x1a0] sm:$0xff]
        %v1305 = vld [vmem:[#allocation4 + $0x1a8] sm:$0xff]
        %v1306 = vld [vmem:[#allocation4 + $0x1b0] sm:$0xff]
        %v1307 = vld [vmem:[#allocation4 + $0x1b8] sm:$0xff]
        %v1308 = vld [vmem:[#allocation4 + $0x1c0] sm:$0xff]
        %v1309 = vld [vmem:[#allocation4 + $0x1c8] sm:$0xff]
        %v1310 = vld [vmem:[#allocation4 + $0x1d0] sm:$0xff]
        %v1311 = vld [vmem:[#allocation4 + $0x1d8] sm:$0xff]
        %v1312 = vld [vmem:[#allocation4 + $0x1e0] sm:$0xff]
        %v1313 = vld [vmem:[#allocation4 + $0x1e8] sm:$0xff]
        %v1314 = vld [vmem:[#allocation4 + $0x1f0] sm:$0xff]
        %v1315 = vld [vmem:[#allocation4 + $0x1f8] sm:$0xff]
        %v1316 = vld [vmem:[#allocation4 + $0x200] sm:$0xff]
        %v1317 = vld [vmem:[#allocation4 + $0x208] sm:$0xff]
        %v1318 = vld [vmem:[#allocation4 + $0x210] sm:$0xff]
        %v1319 = vld [vmem:[#allocation4 + $0x218] sm:$0xff]
        %v1320 = vld [vmem:[#allocation4 + $0x220] sm:$0xff]
        %v1321 = vld [vmem:[#allocation4 + $0x228] sm:$0xff]
        %v1322 = vld [vmem:[#allocation4 + $0x230] sm:$0xff]
        %v1323 = vld [vmem:[#allocation4 + $0x238] sm:$0xff]
        %v1324 = vld [vmem:[#allocation4 + $0x240] sm:$0xff]
        %v1325 = vld [vmem:[#allocation4 + $0x248] sm:$0xff]
        %v1326 = vld [vmem:[#allocation4 + $0x250] sm:$0xff]
        %v1327 = vld [vmem:[#allocation4 + $0x258] sm:$0xff]
        %v1328 = vld [vmem:[#allocation4 + $0x260] sm:$0xff]
        %v1329 = vld [vmem:[#allocation4 + $0x268] sm:$0xff]
        %v1330 = vld [vmem:[#allocation4 + $0x270] sm:$0xff]
        %v1331 = vld [vmem:[#allocation4 + $0x278] sm:$0xff]
        %v1332 = vld [vmem:[#allocation4 + $0x280] sm:$0xff]
        %v1333 = vpack.c.bf16 %v1255, %v1252
        %v1334 = vpack.c.bf16 %v1256, %v1253
        %v1335 = vpack.c.bf16 %v1257, %v1254
        %v1336 = vpack.c.bf16 %v1261, %v1258
        %v1337 = vpack.c.bf16 %v1262, %v1259
        %v1338 = vpack.c.bf16 %v1263, %v1260
        %v1339 = vpack.c.bf16 %v1267, %v1264
        %v1340 = vpack.c.bf16 %v1268, %v1265
        %v1341 = vpack.c.bf16 %v1269, %v1266
        %v1342 = vpack.c.bf16 %v1273, %v1270
        %v1343 = vpack.c.bf16 %v1274, %v1271
        %v1344 = vpack.c.bf16 %v1275, %v1272
        %v1345 = vpack.c.bf16 %v1279, %v1276
        %v1346 = vpack.c.bf16 %v1280, %v1277
        %v1347 = vpack.c.bf16 %v1281, %v1278
        %v1348 = vpack.c.bf16 %v1285, %v1282
        %v1349 = vpack.c.bf16 %v1286, %v1283
        %v1350 = vpack.c.bf16 %v1287, %v1284
        %v1351 = vpack.c.bf16 %v1291, %v1288
        %v1352 = vpack.c.bf16 %v1292, %v1289
        %v1353 = vpack.c.bf16 %v1293, %v1290
        %v1354 = vpack.c.bf16 %v1297, %v1294
        %v1355 = vpack.c.bf16 %v1298, %v1295
        %v1356 = vpack.c.bf16 %v1299, %v1296
        %v1357 = vpack.c.bf16 %v1303, %v1300
        %v1358 = vpack.c.bf16 %v1304, %v1301
        %v1359 = vpack.c.bf16 %v1305, %v1302
        %v1360 = vpack.c.bf16 %v1309, %v1306
        %v1361 = vpack.c.bf16 %v1310, %v1307
        %v1362 = vpack.c.bf16 %v1311, %v1308
        %v1363 = vpack.c.bf16 %v1315, %v1312
        %v1364 = vpack.c.bf16 %v1316, %v1313
        %v1365 = vpack.c.bf16 %v1317, %v1314
        %v1366 = vpack.c.bf16 %v1321, %v1318
        %v1367 = vpack.c.bf16 %v1322, %v1319
        %v1368 = vpack.c.bf16 %v1323, %v1320
        %v1369 = vpack.c.bf16 %v1327, %v1324
        %v1370 = vpack.c.bf16 %v1328, %v1325
        %v1371 = vpack.c.bf16 %v1329, %v1326
        %v1372 = vpack.c.bf16 %v1330, %v1330
        %v1373 = vpack.c.bf16 %v1331, %v1331
        %v1374 = vpack.c.bf16 %v1332, %v1332
        %v1375 = vld [vmem:[%s3] sm:$0xff]
        %v1376 = vld [vmem:[%s3 + $0x8] sm:$0x33]
        %v1377 = vld [vmem:[%s4] sm:$0xff]
        %v1378 = vld [vmem:[%s4 + $0x8] sm:$0xf]
        %1380 = vset.pattern.permute.xlu0 0
        %1381 = vperm.xlu0 %1380, %v1377
        %v1382 = vpop.permute.xlu0 %1381
        %1385 = vset.pattern.permute.xlu0 0
        %1386 = vperm.xlu0 %1385, %v1378
        %v1387 = vpop.permute.xlu0 %1386
        %v1391 = vunpack.c.l.b16 %v1375
        %v1392 = vunpack.c.h.b16 %v1375
        %v1393 = vunpack.c.l.b16 %v1376
        %v1394 = vunpack.c.h.b16 %v1376
        %v1395 = vpack.c.b16 %v1393, %v1391
        %v1396 = vpack.c.b16 %v1394, %v1392
        %vm1398 = vcmask 719872
        %v1400 = vsel %vm1398, %v1396, 0
        %vm1402 = vcmask 1043456
        %v1404 = vsel %vm1402, %v1372, 0
        %v1407 = vsel %vm1402, %v1373, 0
        %v1410 = vsel %vm1402, %v1374, 0
        %1412 = vmatprep.subr.bf16.mxu0 %v1334
        %1413 = vmatpush1.bf16.msra.mxu0 %v1333
        %1414 = vmatprep.subr.bf16.mxu0 %v1337
        %1415 = vmatpush1.bf16.msra.mxu0 %v1336
        %1416 = vmatprep.subr.bf16.mxu0 %v1340
        %1417 = vmatpush1.bf16.msra.mxu0 %v1339
        %1418 = vmatprep.subr.bf16.mxu0 %v1343
        %1419 = vmatpush1.bf16.msra.mxu0 %v1342
        %1420 = vmatprep.subr.bf16.mxu0 %v1346
        %1421 = vmatpush1.bf16.msra.mxu0 %v1345
        %1422 = vmatprep.subr.bf16.mxu0 %v1349
        %1423 = vmatpush1.bf16.msra.mxu0 %v1348
        %1424 = vmatprep.subr.bf16.mxu0 %v1352
        %1425 = vmatpush1.bf16.msra.mxu0 %v1351
        %1426 = vmatprep.subr.bf16.mxu0 %v1355
        %1427 = vmatpush1.bf16.msra.mxu0 %v1354
        %1428 = vmatprep.subr.bf16.mxu0 %v1358
        %1429 = vmatpush1.bf16.msra.mxu0 %v1357
        %1430 = vmatprep.subr.bf16.mxu0 %v1361
        %1431 = vmatpush1.bf16.msra.mxu0 %v1360
        %1432 = vmatprep.subr.bf16.mxu0 %v1364
        %1433 = vmatpush1.bf16.msra.mxu0 %v1363
        %1434 = vmatprep.subr.bf16.mxu0 %v1367
        %1435 = vmatpush1.bf16.msra.mxu0 %v1366
        %1436 = vmatprep.subr.bf16.mxu0 %v1370
        %1437 = vmatpush1.bf16.msra.mxu0 %v1369
        %1438 = vmatprep.subr.bf16.mxu0 %v1407
        %1439 = vmatpush1.bf16.msra.mxu0 %v1404
        %1440 = vmatprep.subr.bf16.mxu0 0
        %1441 = vmatpush1.bf16.msra.mxu0 0
        %1442 = vmatprep.subr.bf16.mxu0 0
        %1443 = vmatpush1.bf16.msra.mxu0 0
        %1444 = vmatprep.mubr.bf16.mxu0 %v1400
        %1445 = vmatmul.mubr.bf16.gmra.mrb[0].mxu0 %v1395
        %v1446 = vpop.f32.mrb[0].mxu0
        %v1447 = vadd.f32 %v1382, %v1446
        %v1448 = vpop.f32.mrb[0].mxu0
        %v1449 = vadd.f32 %v1382, %v1448
        %v1450 = vpop.f32.mrb[0].mxu0
        %v1451 = vadd.f32 %v1387, %v1450
        %v1452 = vpop.f32.mrb[0].mxu0
        %v1453 = vadd.f32 %v1387, %v1452
        %1454 = vdwg.mxu0
        %1455 = vmatprep.subr.bf16.mxu0 0
        %1456 = vmatpush1.bf16.msra.mxu0 %v1335
        %1457 = vmatprep.subr.bf16.mxu0 0
        %1458 = vmatpush1.bf16.msra.mxu0 %v1338
        %1459 = vmatprep.subr.bf16.mxu0 0
        %1460 = vmatpush1.bf16.msra.mxu0 %v1341
        %1461 = vmatprep.subr.bf16.mxu0 0
        %1462 = vmatpush1.bf16.msra.mxu0 %v1344
        %1463 = vmatprep.subr.bf16.mxu0 0
        %1464 = vmatpush1.bf16.msra.mxu0 %v1347
        %1465 = vmatprep.subr.bf16.mxu0 0
        %1466 = vmatpush1.bf16.msra.mxu0 %v1350
        %1467 = vmatprep.subr.bf16.mxu0 0
        %1468 = vmatpush1.bf16.msra.mxu0 %v1353
        %1469 = vmatprep.subr.bf16.mxu0 0
        %1470 = vmatpush1.bf16.msra.mxu0 %v1356
        %1471 = vmatprep.subr.bf16.mxu0 0
        %1472 = vmatpush1.bf16.msra.mxu0 %v1359
        %1473 = vmatprep.subr.bf16.mxu0 0
        %1474 = vmatpush1.bf16.msra.mxu0 %v1362
        %1475 = vmatprep.subr.bf16.mxu0 0
        %1476 = vmatpush1.bf16.msra.mxu0 %v1365
        %1477 = vmatprep.subr.bf16.mxu0 0
        %1478 = vmatpush1.bf16.msra.mxu0 %v1368
        %1479 = vmatprep.subr.bf16.mxu0 0
        %1480 = vmatpush1.bf16.msra.mxu0 %v1371
        %1481 = vmatprep.subr.bf16.mxu0 0
        %1482 = vmatpush1.bf16.msra.mxu0 %v1410
        %1483 = vmatprep.subr.bf16.mxu0 0
        %1484 = vmatpush1.bf16.msra.mxu0 0
        %1485 = vmatprep.subr.bf16.mxu0 0
        %1486 = vmatpush1.bf16.msra.mxu0 0
        %1487 = vmatprep.mubr.bf16.mxu0 %v1400
        %1488 = vmatmul.mubr.bf16.gmra.mrb[0].mxu0 %v1395
        %v1489 = vpop.f32.mrb[0].mxu0
        %v1490 = vadd.f32 %v1382, %v1489
        %v1491 = vpop.f32.mrb[0].mxu0
        %v1492 = vpop.f32.mrb[0].mxu0
        %v1493 = vadd.f32 %v1387, %v1492
        %v1494 = vpop.f32.mrb[0].mxu0
        %1495 = vdwg.mxu0
        %1496 = vst [vmem:[#allocation3] sm:$0xff] 0.0
        %1497 = vst [vmem:[#allocation3 + $0x8] sm:$0xff] 0.0
        %1498 = vst.msk [vmem:[#allocation3 + $0x10] sm:$0xff] %vm666, 0.0
        %1499 = vst [vmem:[#allocation3 + $0x18] sm:$0xf] 0.0
        %1500 = vst [vmem:[#allocation3 + $0x20] sm:$0xf] 0.0
        %vm1501 = vcmask 617472
        %1502 = vst.msk [vmem:[#allocation3 + $0x28] sm:$0xf] %vm1501, 0.0
        %v1503 = vmul.f32 %v1447, %v678
        %v1504 = vmul.f32 %v1449, %v682
        %v1505 = vmul.f32 %v1490, %v686
        %v1506 = vmul.f32 %v1451, %v678
        %v1507 = vmul.f32 %v1453, %v682
        %v1508 = vmul.f32 %v1493, %v686
        %1515 = vrot.lane.b32.xlu0 %v1503, 19
        %v1516 = vpop.permute.xlu0 %1515
        %1517 = vrot.lane.b32.xlu0 %v1504, 19
        %v1518 = vpop.permute.xlu0 %1517
        %1519 = vrot.lane.b32.xlu0 %v1505, 19
        %v1520 = vpop.permute.xlu0 %1519
        %1521 = vrot.lane.b32.xlu0 %v1506, 19
        %v1522 = vpop.permute.xlu0 %1521
        %1523 = vrot.lane.b32.xlu0 %v1507, 19
        %v1524 = vpop.permute.xlu0 %1523
        %1525 = vrot.lane.b32.xlu0 %v1508, 19
        %v1526 = vpop.permute.xlu0 %1525
        %v1527 = vsel %vm726, %v1516, %v1518
        %v1528 = vsel %vm726, %v1518, %v1520
        %v1529 = vsel %vm726, %v1522, %v1524
        %v1530 = vsel %vm726, %v1524, %v1526
        %1537 = vst.msk [vmem:[#allocation3] sm:$0xff] %vm742, %v1516
        %1538 = vst [vmem:[#allocation3 + $0x8] sm:$0xff] %v1527
        %1539 = vst.msk [vmem:[#allocation3 + $0x10] sm:$0xff] %vm745, %v1528
        %vm1540 = vcmask 1043608
        %1541 = vst.msk [vmem:[#allocation3 + $0x18] sm:$0xf] %vm1540, %v1522
        %1542 = vst [vmem:[#allocation3 + $0x20] sm:$0xf] %v1529
        %vm1543 = vcmask 412672
        %1544 = vst.msk [vmem:[#allocation3 + $0x28] sm:$0xf] %vm1543, %v1530
        %v1545 = vld [vmem:[#allocation3] sm:$0xff]
        %v1546 = vld [vmem:[#allocation3 + $0x8] sm:$0xff]
        %v1547 = vld [vmem:[#allocation3 + $0x10] sm:$0xff]
        %v1548 = vld [vmem:[#allocation3 + $0x18] sm:$0xf]
        %v1549 = vld [vmem:[#allocation3 + $0x20] sm:$0xf]
        %v1550 = vld [vmem:[#allocation3 + $0x28] sm:$0xf]
        %1551 = vst [vmem:[#allocation4] sm:$0xff] %v1545
        %1552 = vst [vmem:[#allocation4 + $0x8] sm:$0xff] %v1546
        %1553 = vst.msk [vmem:[#allocation4 + $0x10] sm:$0xff] %vm764, %v1547
        %1554 = vst [vmem:[#allocation4 + $0x18] sm:$0xf] %v1548
        %1555 = vst [vmem:[#allocation4 + $0x20] sm:$0xf] %v1549
        %1556 = vst.msk [vmem:[#allocation4 + $0x28] sm:$0xf] %vm328, %v1550
        %v1557 = vld [vmem:[#allocation3] sm:$0xff]
        %v1558 = vld [vmem:[#allocation3 + $0x8] sm:$0xff]
        %v1559 = vld [vmem:[#allocation3 + $0x10] sm:$0xff]
        %v1560 = vld [vmem:[#allocation3 + $0x18] sm:$0xf]
        %v1561 = vld [vmem:[#allocation3 + $0x20] sm:$0xf]
        %v1562 = vld [vmem:[#allocation3 + $0x28] sm:$0xf]
        %v1569 = vrot.slane %v1557, 4
        %v1570 = vrot.slane %v1558, 4
        %v1571 = vrot.slane %v1559, 4
        %v1572 = vrot.slane %v1560, 4
        %v1573 = vsel %vm1402, %v1569, %v1572
        %v1574 = vrot.slane %v1561, 4
        %v1575 = vsel %vm1402, %v1570, %v1574
        %v1576 = vrot.slane %v1562, 4
        %v1577 = vsel %vm1402, %v1571, %v1576
        %1578 = vrot.lane.b32.xlu0 %v1569, 127
        %v1579 = vpop.permute.xlu0 %1578
        %1580 = vrot.lane.b32.xlu0 %v1570, 127
        %v1581 = vpop.permute.xlu0 %1580
        %1582 = vrot.lane.b32.xlu0 %v1571, 127
        %v1583 = vpop.permute.xlu0 %1582
        %1584 = vrot.lane.b32.xlu0 %v1573, 127
        %v1585 = vpop.permute.xlu0 %1584
        %1586 = vrot.lane.b32.xlu0 %v1575, 127
        %v1587 = vpop.permute.xlu0 %1586
        %1588 = vrot.lane.b32.xlu0 %v1577, 127
        %v1589 = vpop.permute.xlu0 %1588
        %v1590 = vsel %vm342, %v1579, %v1581
        %v1591 = vsel %vm342, %v1581, %v1583
        %v1592 = vsel %vm342, %v1585, %v1587
        %v1593 = vsel %vm342, %v1587, %v1589
        %1600 = vst [vmem:[#allocation4 + $0x18] sm:$0xf0] %v1590
        %1601 = vst [vmem:[#allocation4 + $0x20] sm:$0xf0] %v1591
        %1602 = vst.msk [vmem:[#allocation4 + $0x28] sm:$0xf0] %vm350, %v1583
        %1603 = vst [vmem:[#allocation4 + $0x30] sm:$0xff] %v1592
        %1604 = vst [vmem:[#allocation4 + $0x38] sm:$0xff] %v1593
        %1605 = vst.msk [vmem:[#allocation4 + $0x40] sm:$0xff] %vm764, %v1589
        %v1606 = vld [vmem:[#allocation3] sm:$0xff]
        %v1607 = vld [vmem:[#allocation3 + $0x8] sm:$0xff]
        %v1608 = vld [vmem:[#allocation3 + $0x10] sm:$0xff]
        %v1609 = vld [vmem:[#allocation3 + $0x18] sm:$0xf]
        %v1610 = vld [vmem:[#allocation3 + $0x20] sm:$0xf]
        %v1611 = vld [vmem:[#allocation3 + $0x28] sm:$0xf]
        %1618 = vrot.lane.b32.xlu0 %v1606, 126
        %v1619 = vpop.permute.xlu0 %1618
        %1620 = vrot.lane.b32.xlu0 %v1607, 126
        %v1621 = vpop.permute.xlu0 %1620
        %1622 = vrot.lane.b32.xlu0 %v1608, 126
        %v1623 = vpop.permute.xlu0 %1622
        %1624 = vrot.lane.b32.xlu0 %v1609, 126
        %v1625 = vpop.permute.xlu0 %1624
        %1626 = vrot.lane.b32.xlu0 %v1610, 126
        %v1627 = vpop.permute.xlu0 %1626
        %1628 = vrot.lane.b32.xlu0 %v1611, 126
        %v1629 = vpop.permute.xlu0 %1628
        %v1630 = vsel %vm363, %v1619, %v1621
        %v1631 = vsel %vm363, %v1621, %v1623
        %v1632 = vsel %vm363, %v1625, %v1627
        %v1633 = vsel %vm363, %v1627, %v1629
        %1640 = vst [vmem:[#allocation4 + $0x48] sm:$0xff] %v1630
        %1641 = vst [vmem:[#allocation4 + $0x50] sm:$0xff] %v1631
        %1642 = vst.msk [vmem:[#allocation4 + $0x58] sm:$0xff] %vm764, %v1623
        %1643 = vst [vmem:[#allocation4 + $0x60] sm:$0xf] %v1632
        %1644 = vst [vmem:[#allocation4 + $0x68] sm:$0xf] %v1633
        %1645 = vst.msk [vmem:[#allocation4 + $0x70] sm:$0xf] %vm328, %v1629
        %v1646 = vld [vmem:[#allocation3] sm:$0xff]
        %v1647 = vld [vmem:[#allocation3 + $0x8] sm:$0xff]
        %v1648 = vld [vmem:[#allocation3 + $0x10] sm:$0xff]
        %v1649 = vld [vmem:[#allocation3 + $0x18] sm:$0xf]
        %v1650 = vld [vmem:[#allocation3 + $0x20] sm:$0xf]
        %v1651 = vld [vmem:[#allocation3 + $0x28] sm:$0xf]
        %v1658 = vrot.slane %v1646, 4
        %v1659 = vrot.slane %v1647, 4
        %v1660 = vrot.slane %v1648, 4
        %v1661 = vrot.slane %v1649, 4
        %v1662 = vsel %vm1402, %v1658, %v1661
        %v1663 = vrot.slane %v1650, 4
        %v1664 = vsel %vm1402, %v1659, %v1663
        %v1665 = vrot.slane %v1651, 4
        %v1666 = vsel %vm1402, %v1660, %v1665
        %1667 = vrot.lane.b32.xlu0 %v1658, 110
        %v1668 = vpop.permute.xlu0 %1667
        %1669 = vrot.lane.b32.xlu0 %v1659, 110
        %v1670 = vpop.permute.xlu0 %1669
        %1671 = vrot.lane.b32.xlu0 %v1660, 110
        %v1672 = vpop.permute.xlu0 %1671
        %1673 = vrot.lane.b32.xlu0 %v1662, 110
        %v1674 = vpop.permute.xlu0 %1673
        %1675 = vrot.lane.b32.xlu0 %v1664, 110
        %v1676 = vpop.permute.xlu0 %1675
        %1677 = vrot.lane.b32.xlu0 %v1666, 110
        %v1678 = vpop.permute.xlu0 %1677
        %v1679 = vsel %vm384, %v1668, %v1670
        %v1680 = vsel %vm384, %v1670, %v1672
        %v1681 = vsel %vm384, %v1674, %v1676
        %v1682 = vsel %vm384, %v1676, %v1678
        %1689 = vst [vmem:[#allocation4 + $0x60] sm:$0xf0] %v1679
        %1690 = vst [vmem:[#allocation4 + $0x68] sm:$0xf0] %v1680
        %1691 = vst.msk [vmem:[#allocation4 + $0x70] sm:$0xf0] %vm350, %v1672
        %1692 = vst [vmem:[#allocation4 + $0x78] sm:$0xff] %v1681
        %1693 = vst [vmem:[#allocation4 + $0x80] sm:$0xff] %v1682
        %1694 = vst.msk [vmem:[#allocation4 + $0x88] sm:$0xff] %vm764, %v1678
        %v1695 = vld [vmem:[#allocation3] sm:$0xff]
        %v1696 = vld [vmem:[#allocation3 + $0x8] sm:$0xff]
        %v1697 = vld [vmem:[#allocation3 + $0x10] sm:$0xff]
        %v1698 = vld [vmem:[#allocation3 + $0x18] sm:$0xf]
        %v1699 = vld [vmem:[#allocation3 + $0x20] sm:$0xf]
        %v1700 = vld [vmem:[#allocation3 + $0x28] sm:$0xf]
        %1707 = vrot.lane.b32.xlu0 %v1695, 109
        %v1708 = vpop.permute.xlu0 %1707
        %1709 = vrot.lane.b32.xlu0 %v1696, 109
        %v1710 = vpop.permute.xlu0 %1709
        %1711 = vrot.lane.b32.xlu0 %v1697, 109
        %v1712 = vpop.permute.xlu0 %1711
        %1713 = vrot.lane.b32.xlu0 %v1698, 109
        %v1714 = vpop.permute.xlu0 %1713
        %1715 = vrot.lane.b32.xlu0 %v1699, 109
        %v1716 = vpop.permute.xlu0 %1715
        %1717 = vrot.lane.b32.xlu0 %v1700, 109
        %v1718 = vpop.permute.xlu0 %1717
        %v1719 = vsel %vm404, %v1708, %v1710
        %v1720 = vsel %vm404, %v1710, %v1712
        %v1721 = vsel %vm404, %v1714, %v1716
        %v1722 = vsel %vm404, %v1716, %v1718
        %1729 = vst [vmem:[#allocation4 + $0x90] sm:$0xff] %v1719
        %1730 = vst [vmem:[#allocation4 + $0x98] sm:$0xff] %v1720
        %1731 = vst.msk [vmem:[#allocation4 + $0xa0] sm:$0xff] %vm764, %v1712
        %1732 = vst [vmem:[#allocation4 + $0xa8] sm:$0xf] %v1721
        %1733 = vst [vmem:[#allocation4 + $0xb0] sm:$0xf] %v1722
        %1734 = vst.msk [vmem:[#allocation4 + $0xb8] sm:$0xf] %vm328, %v1718
        %v1735 = vld [vmem:[#allocation3] sm:$0xff]
        %v1736 = vld [vmem:[#allocation3 + $0x8] sm:$0xff]
        %v1737 = vld [vmem:[#allocation3 + $0x10] sm:$0xff]
        %v1738 = vld [vmem:[#allocation3 + $0x18] sm:$0xf]
        %v1739 = vld [vmem:[#allocation3 + $0x20] sm:$0xf]
        %v1740 = vld [vmem:[#allocation3 + $0x28] sm:$0xf]
        %v1747 = vrot.slane %v1735, 4
        %v1748 = vrot.slane %v1736, 4
        %v1749 = vrot.slane %v1737, 4
        %v1750 = vrot.slane %v1738, 4
        %v1751 = vsel %vm1402, %v1747, %v1750
        %v1752 = vrot.slane %v1739, 4
        %v1753 = vsel %vm1402, %v1748, %v1752
        %v1754 = vrot.slane %v1740, 4
        %v1755 = vsel %vm1402, %v1749, %v1754
        %1756 = vrot.lane.b32.xlu0 %v1747, 108
        %v1757 = vpop.permute.xlu0 %1756
        %1758 = vrot.lane.b32.xlu0 %v1748, 108
        %v1759 = vpop.permute.xlu0 %1758
        %1760 = vrot.lane.b32.xlu0 %v1749, 108
        %v1761 = vpop.permute.xlu0 %1760
        %1762 = vrot.lane.b32.xlu0 %v1751, 108
        %v1763 = vpop.permute.xlu0 %1762
        %1764 = vrot.lane.b32.xlu0 %v1753, 108
        %v1765 = vpop.permute.xlu0 %1764
        %1766 = vrot.lane.b32.xlu0 %v1755, 108
        %v1767 = vpop.permute.xlu0 %1766
        %v1768 = vsel %vm425, %v1757, %v1759
        %v1769 = vsel %vm425, %v1759, %v1761
        %v1770 = vsel %vm425, %v1763, %v1765
        %v1771 = vsel %vm425, %v1765, %v1767
        %1778 = vst [vmem:[#allocation4 + $0xa8] sm:$0xf0] %v1768
        %1779 = vst [vmem:[#allocation4 + $0xb0] sm:$0xf0] %v1769
        %1780 = vst.msk [vmem:[#allocation4 + $0xb8] sm:$0xf0] %vm350, %v1761
        %1781 = vst [vmem:[#allocation4 + $0xc0] sm:$0xff] %v1770
        %1782 = vst [vmem:[#allocation4 + $0xc8] sm:$0xff] %v1771
        %1783 = vst.msk [vmem:[#allocation4 + $0xd0] sm:$0xff] %vm764, %v1767
        %v1784 = vld [vmem:[#allocation3] sm:$0xff]
        %v1785 = vld [vmem:[#allocation3 + $0x8] sm:$0xff]
        %v1786 = vld [vmem:[#allocation3 + $0x10] sm:$0xff]
        %v1787 = vld [vmem:[#allocation3 + $0x18] sm:$0xf]
        %v1788 = vld [vmem:[#allocation3 + $0x20] sm:$0xf]
        %v1789 = vld [vmem:[#allocation3 + $0x28] sm:$0xf]
        %1796 = vrot.lane.b32.xlu0 %v1784, 92
        %v1797 = vpop.permute.xlu0 %1796
        %1798 = vrot.lane.b32.xlu0 %v1785, 92
        %v1799 = vpop.permute.xlu0 %1798
        %1800 = vrot.lane.b32.xlu0 %v1786, 92
        %v1801 = vpop.permute.xlu0 %1800
        %1802 = vrot.lane.b32.xlu0 %v1787, 92
        %v1803 = vpop.permute.xlu0 %1802
        %1804 = vrot.lane.b32.xlu0 %v1788, 92
        %v1805 = vpop.permute.xlu0 %1804
        %1806 = vrot.lane.b32.xlu0 %v1789, 92
        %v1807 = vpop.permute.xlu0 %1806
        %v1808 = vsel %vm445, %v1797, %v1799
        %v1809 = vsel %vm445, %v1799, %v1801
        %v1810 = vsel %vm445, %v1803, %v1805
        %v1811 = vsel %vm445, %v1805, %v1807
        %1818 = vst [vmem:[#allocation4 + $0xd8] sm:$0xff] %v1808
        %1819 = vst [vmem:[#allocation4 + $0xe0] sm:$0xff] %v1809
        %1820 = vst.msk [vmem:[#allocation4 + $0xe8] sm:$0xff] %vm764, %v1801
        %1821 = vst [vmem:[#allocation4 + $0xf0] sm:$0xf] %v1810
        %1822 = vst [vmem:[#allocation4 + $0xf8] sm:$0xf] %v1811
        %1823 = vst.msk [vmem:[#allocation4 + $0x100] sm:$0xf] %vm328, %v1807
        %v1824 = vld [vmem:[#allocation3] sm:$0xff]
        %v1825 = vld [vmem:[#allocation3 + $0x8] sm:$0xff]
        %v1826 = vld [vmem:[#allocation3 + $0x10] sm:$0xff]
        %v1827 = vld [vmem:[#allocation3 + $0x18] sm:$0xf]
        %v1828 = vld [vmem:[#allocation3 + $0x20] sm:$0xf]
        %v1829 = vld [vmem:[#allocation3 + $0x28] sm:$0xf]
        %v1836 = vrot.slane %v1824, 4
        %v1837 = vrot.slane %v1825, 4
        %v1838 = vrot.slane %v1826, 4
        %v1839 = vrot.slane %v1827, 4
        %v1840 = vsel %vm1402, %v1836, %v1839
        %v1841 = vrot.slane %v1828, 4
        %v1842 = vsel %vm1402, %v1837, %v1841
        %v1843 = vrot.slane %v1829, 4
        %v1844 = vsel %vm1402, %v1838, %v1843
        %1845 = vrot.lane.b32.xlu0 %v1836, 91
        %v1846 = vpop.permute.xlu0 %1845
        %1847 = vrot.lane.b32.xlu0 %v1837, 91
        %v1848 = vpop.permute.xlu0 %1847
        %1849 = vrot.lane.b32.xlu0 %v1838, 91
        %v1850 = vpop.permute.xlu0 %1849
        %1851 = vrot.lane.b32.xlu0 %v1840, 91
        %v1852 = vpop.permute.xlu0 %1851
        %1853 = vrot.lane.b32.xlu0 %v1842, 91
        %v1854 = vpop.permute.xlu0 %1853
        %1855 = vrot.lane.b32.xlu0 %v1844, 91
        %v1856 = vpop.permute.xlu0 %1855
        %v1857 = vsel %vm466, %v1846, %v1848
        %v1858 = vsel %vm466, %v1848, %v1850
        %v1859 = vsel %vm466, %v1852, %v1854
        %v1860 = vsel %vm466, %v1854, %v1856
        %1867 = vst [vmem:[#allocation4 + $0xf0] sm:$0xf0] %v1857
        %1868 = vst [vmem:[#allocation4 + $0xf8] sm:$0xf0] %v1858
        %1869 = vst.msk [vmem:[#allocation4 + $0x100] sm:$0xf0] %vm350, %v1850
        %1870 = vst [vmem:[#allocation4 + $0x108] sm:$0xff] %v1859
        %1871 = vst [vmem:[#allocation4 + $0x110] sm:$0xff] %v1860
        %1872 = vst.msk [vmem:[#allocation4 + $0x118] sm:$0xff] %vm764, %v1856
        %v1873 = vld [vmem:[#allocation3] sm:$0xff]
        %v1874 = vld [vmem:[#allocation3 + $0x8] sm:$0xff]
        %v1875 = vld [vmem:[#allocation3 + $0x10] sm:$0xff]
        %v1876 = vld [vmem:[#allocation3 + $0x18] sm:$0xf]
        %v1877 = vld [vmem:[#allocation3 + $0x20] sm:$0xf]
        %v1878 = vld [vmem:[#allocation3 + $0x28] sm:$0xf]
        %1885 = vrot.lane.b32.xlu0 %v1873, 90
        %v1886 = vpop.permute.xlu0 %1885
        %1887 = vrot.lane.b32.xlu0 %v1874, 90
        %v1888 = vpop.permute.xlu0 %1887
        %1889 = vrot.lane.b32.xlu0 %v1875, 90
        %v1890 = vpop.permute.xlu0 %1889
        %1891 = vrot.lane.b32.xlu0 %v1876, 90
        %v1892 = vpop.permute.xlu0 %1891
        %1893 = vrot.lane.b32.xlu0 %v1877, 90
        %v1894 = vpop.permute.xlu0 %1893
        %1895 = vrot.lane.b32.xlu0 %v1878, 90
        %v1896 = vpop.permute.xlu0 %1895
        %v1897 = vsel %vm486, %v1886, %v1888
        %v1898 = vsel %vm486, %v1888, %v1890
        %v1899 = vsel %vm486, %v1892, %v1894
        %v1900 = vsel %vm486, %v1894, %v1896
        %1907 = vst [vmem:[#allocation4 + $0x120] sm:$0xff] %v1897
        %1908 = vst [vmem:[#allocation4 + $0x128] sm:$0xff] %v1898
        %1909 = vst.msk [vmem:[#allocation4 + $0x130] sm:$0xff] %vm764, %v1890
        %1910 = vst [vmem:[#allocation4 + $0x138] sm:$0xf] %v1899
        %1911 = vst [vmem:[#allocation4 + $0x140] sm:$0xf] %v1900
        %1912 = vst.msk [vmem:[#allocation4 + $0x148] sm:$0xf] %vm328, %v1896
        %v1913 = vld [vmem:[#allocation4] sm:$0xff]
        %v1914 = vld [vmem:[#allocation4 + $0x8] sm:$0xff]
        %v1915 = vld [vmem:[#allocation4 + $0x10] sm:$0xff]
        %v1916 = vld [vmem:[#allocation4 + $0x18] sm:$0xff]
        %v1917 = vld [vmem:[#allocation4 + $0x20] sm:$0xff]
        %v1918 = vld [vmem:[#allocation4 + $0x28] sm:$0xff]
        %v1919 = vld [vmem:[#allocation4 + $0x30] sm:$0xff]
        %v1920 = vld [vmem:[#allocation4 + $0x38] sm:$0xff]
        %v1921 = vld [vmem:[#allocation4 + $0x40] sm:$0xff]
        %v1922 = vld [vmem:[#allocation4 + $0x48] sm:$0xff]
        %v1923 = vld [vmem:[#allocation4 + $0x50] sm:$0xff]
        %v1924 = vld [vmem:[#allocation4 + $0x58] sm:$0xff]
        %v1925 = vld [vmem:[#allocation4 + $0x60] sm:$0xff]
        %v1926 = vld [vmem:[#allocation4 + $0x68] sm:$0xff]
        %v1927 = vld [vmem:[#allocation4 + $0x70] sm:$0xff]
        %v1928 = vld [vmem:[#allocation4 + $0x78] sm:$0xff]
        %v1929 = vld [vmem:[#allocation4 + $0x80] sm:$0xff]
        %v1930 = vld [vmem:[#allocation4 + $0x88] sm:$0xff]
        %v1931 = vld [vmem:[#allocation4 + $0x90] sm:$0xff]
        %v1932 = vld [vmem:[#allocation4 + $0x98] sm:$0xff]
        %v1933 = vld [vmem:[#allocation4 + $0xa0] sm:$0xff]
        %v1934 = vld [vmem:[#allocation4 + $0xa8] sm:$0xff]
        %v1935 = vld [vmem:[#allocation4 + $0xb0] sm:$0xff]
        %v1936 = vld [vmem:[#allocation4 + $0xb8] sm:$0xff]
        %v1937 = vld [vmem:[#allocation4 + $0xc0] sm:$0xff]
        %v1938 = vld [vmem:[#allocation4 + $0xc8] sm:$0xff]
        %v1939 = vld [vmem:[#allocation4 + $0xd0] sm:$0xff]
        %v1940 = vld [vmem:[#allocation4 + $0xd8] sm:$0xff]
        %v1941 = vld [vmem:[#allocation4 + $0xe0] sm:$0xff]
        %v1942 = vld [vmem:[#allocation4 + $0xe8] sm:$0xff]
        %v1943 = vld [vmem:[#allocation4 + $0xf0] sm:$0xff]
        %v1944 = vld [vmem:[#allocation4 + $0xf8] sm:$0xff]
        %v1945 = vld [vmem:[#allocation4 + $0x100] sm:$0xff]
        %v1946 = vld [vmem:[#allocation4 + $0x108] sm:$0xff]
        %v1947 = vld [vmem:[#allocation4 + $0x110] sm:$0xff]
        %v1948 = vld [vmem:[#allocation4 + $0x118] sm:$0xff]
        %v1949 = vld [vmem:[#allocation4 + $0x120] sm:$0xff]
        %v1950 = vld [vmem:[#allocation4 + $0x128] sm:$0xff]
        %v1951 = vld [vmem:[#allocation4 + $0x130] sm:$0xff]
        %v1952 = vld [vmem:[#allocation4 + $0x138] sm:$0xf]
        %v1953 = vld [vmem:[#allocation4 + $0x140] sm:$0xf]
        %v1954 = vld [vmem:[#allocation4 + $0x148] sm:$0xf]
        %v1955 = vpack.c.bf16 %v1916, %v1913
        %v1956 = vpack.c.bf16 %v1917, %v1914
        %v1957 = vpack.c.bf16 %v1918, %v1915
        %v1958 = vpack.c.bf16 %v1922, %v1919
        %v1959 = vpack.c.bf16 %v1923, %v1920
        %v1960 = vpack.c.bf16 %v1924, %v1921
        %v1961 = vpack.c.bf16 %v1928, %v1925
        %v1962 = vpack.c.bf16 %v1929, %v1926
        %v1963 = vpack.c.bf16 %v1930, %v1927
        %v1964 = vpack.c.bf16 %v1934, %v1931
        %v1965 = vpack.c.bf16 %v1935, %v1932
        %v1966 = vpack.c.bf16 %v1936, %v1933
        %v1967 = vpack.c.bf16 %v1940, %v1937
        %v1968 = vpack.c.bf16 %v1941, %v1938
        %v1969 = vpack.c.bf16 %v1942, %v1939
        %v1970 = vpack.c.bf16 %v1946, %v1943
        %v1971 = vpack.c.bf16 %v1947, %v1944
        %v1972 = vpack.c.bf16 %v1948, %v1945
        %v1973 = vpack.c.bf16 %v1952, %v1949
        %v1974 = vpack.c.bf16 %v1953, %v1950
        %v1975 = vpack.c.bf16 %v1954, %v1951
        %v1976 = vld [vmem:[%s5] sm:$0x3]
        %v1977 = vld [vmem:[%s6] sm:$0xf]
        %1979 = vset.pattern.permute.xlu0 0
        %1980 = vperm.xlu0 %1979, %v1977
        %v1981 = vpop.permute.xlu0 %1980
        %v1984 = vsel %vm425, %v1976, 0
        %vm1986 = vcmask 1045504
        %v1988 = vsel %vm1986, %v1973, 0
        %v1991 = vsel %vm1986, %v1974, 0
        %v1994 = vsel %vm1986, %v1975, 0
        %1996 = vmatprep.subr.bf16.mxu0 %v1956
        %1997 = vmatpush1.bf16.msra.mxu0 %v1955
        %1998 = vmatprep.subr.bf16.mxu0 %v1959
        %1999 = vmatpush1.bf16.msra.mxu0 %v1958
        %2000 = vmatprep.subr.bf16.mxu0 %v1962
        %2001 = vmatpush1.bf16.msra.mxu0 %v1961
        %2002 = vmatprep.subr.bf16.mxu0 %v1965
        %2003 = vmatpush1.bf16.msra.mxu0 %v1964
        %2004 = vmatprep.subr.bf16.mxu0 %v1968
        %2005 = vmatpush1.bf16.msra.mxu0 %v1967
        %2006 = vmatprep.subr.bf16.mxu0 %v1971
        %2007 = vmatpush1.bf16.msra.mxu0 %v1970
        %2008 = vmatprep.subr.bf16.mxu0 %v1991
        %2009 = vmatpush1.bf16.msra.mxu0 %v1988
        %2010 = vmatprep.subr.bf16.mxu0 0
        %2011 = vmatpush1.bf16.msra.mxu0 0
        %2012 = vmatprep.subr.bf16.mxu0 0
        %2013 = vmatpush1.bf16.msra.mxu0 0
        %2014 = vmatprep.subr.bf16.mxu0 0
        %2015 = vmatpush1.bf16.msra.mxu0 0
        %2016 = vmatprep.subr.bf16.mxu0 0
        %2017 = vmatpush1.bf16.msra.mxu0 0
        %2018 = vmatprep.subr.bf16.mxu0 0
        %2019 = vmatpush1.bf16.msra.mxu0 0
        %2020 = vmatprep.subr.bf16.mxu0 0
        %2021 = vmatpush1.bf16.msra.mxu0 0
        %2022 = vmatprep.subr.bf16.mxu0 0
        %2023 = vmatpush1.bf16.msra.mxu0 0
        %2024 = vmatprep.subr.bf16.mxu0 0
        %2025 = vmatpush1.bf16.msra.mxu0 0
        %2026 = vmatprep.subr.bf16.mxu0 0
        %2027 = vmatpush1.bf16.msra.mxu0 0
        %2028 = vmatprep.mubr.bf16.mxu0 0
        %2029 = vmatmul.mubr.bf16.gmra.mrb[0].mxu0 %v1984
        %v2030 = vpop.f32.mrb[0].mxu0
        %v2031 = vadd.f32 %v1981, %v2030
        %v2032 = vpop.f32.mrb[0].mxu0
        %v2033 = vadd.f32 %v1981, %v2032
        %v2034 = vpop.f32.mrb[0].mxu0
        %v2035 = vpop.f32.mrb[0].mxu0
        %2036 = vdwg.mxu0
        %2037 = vmatprep.subr.bf16.mxu0 0
        %2038 = vmatpush1.bf16.msra.mxu0 %v1957
        %2039 = vmatprep.subr.bf16.mxu0 0
        %2040 = vmatpush1.bf16.msra.mxu0 %v1960
        %2041 = vmatprep.subr.bf16.mxu0 0
        %2042 = vmatpush1.bf16.msra.mxu0 %v1963
        %2043 = vmatprep.subr.bf16.mxu0 0
        %2044 = vmatpush1.bf16.msra.mxu0 %v1966
        %2045 = vmatprep.subr.bf16.mxu0 0
        %2046 = vmatpush1.bf16.msra.mxu0 %v1969
        %2047 = vmatprep.subr.bf16.mxu0 0
        %2048 = vmatpush1.bf16.msra.mxu0 %v1972
        %2049 = vmatprep.subr.bf16.mxu0 0
        %2050 = vmatpush1.bf16.msra.mxu0 %v1994
        %2051 = vmatprep.subr.bf16.mxu0 0
        %2052 = vmatpush1.bf16.msra.mxu0 0
        %2053 = vmatprep.subr.bf16.mxu0 0
        %2054 = vmatpush1.bf16.msra.mxu0 0
        %2055 = vmatprep.subr.bf16.mxu0 0
        %2056 = vmatpush1.bf16.msra.mxu0 0
        %2057 = vmatprep.subr.bf16.mxu0 0
        %2058 = vmatpush1.bf16.msra.mxu0 0
        %2059 = vmatprep.subr.bf16.mxu0 0
        %2060 = vmatpush1.bf16.msra.mxu0 0
        %2061 = vmatprep.subr.bf16.mxu0 0
        %2062 = vmatpush1.bf16.msra.mxu0 0
        %2063 = vmatprep.subr.bf16.mxu0 0
        %2064 = vmatpush1.bf16.msra.mxu0 0
        %2065 = vmatprep.subr.bf16.mxu0 0
        %2066 = vmatpush1.bf16.msra.mxu0 0
        %2067 = vmatprep.subr.bf16.mxu0 0
        %2068 = vmatpush1.bf16.msra.mxu0 0
        %2069 = vmatprep.mubr.bf16.mxu0 0
        %2070 = vmatmul.mubr.bf16.gmra.mrb[0].mxu0 %v1984
        %v2071 = vpop.f32.mrb[0].mxu0
        %v2072 = vadd.f32 %v1981, %v2071
        %v2073 = vpop.f32.mrb[0].mxu0
        %v2074 = vpop.f32.mrb[0].mxu0
        %v2075 = vpop.f32.mrb[0].mxu0
        %2076 = vdwg.mxu0
        %v2079 = vcombine.low %v2031, %v2033
        %2081 = vst [vmem:[%s313] sm:$0xff] %v2079
        %2082 = vst.msk [vmem:[%s313 + $0x8] sm:$0xf] %vm328, %v2072
        %s2083 = sand.u32 %s204, 1
        %s2084 = scalar_lea.sflag [#allocation7], %s2083
        %s2085 = sand.u32 %s204, 1
        %s2086 = smul.addr %s2085, 12
        %s2087 = scalar_lea.vmem [#allocation8], %s2086
        // Predicated region
        $region57: #{tpu_custom_call.1} parent=51 // pred_check
          %p2088 = pneg %p214
        $region58: #{tpu_custom_call.1} parent=51 // pred_check_branch
          %2090 = sbr.rel (%p2088) target = $region60
        $region59: #{tpu_custom_call.1} parent=51 // pred_region
          %s2092 = ssub.s32 192, 192
          %2093 = vsyncadd %s2084, %s2092
          %s2094 = smul.addr %s23, 3
          %s2095 = smul.addr %s2094, 64
          %s2096 = scalar_lea.hbm %s8, %s2095
          %s2098 = sshll.u32 %s2087, 4
          %s2099 = int_to_ptr.vmem [resolvable:$true] %s2098
          %2101 = dma.vmem_to_hbm [thread:$0]  %s2099, 192, %s2096, %s2084
        $region60: #{tpu_custom_call.1} parent=51 // pred_fallthru
          _
      $region52: #{tpu_custom_call.1} parent=5 // pred_fallthru
        _
      %p2102 = scmp.le.s32.totalorder 2, %s18
      // Predicated region
      $region61: #{tpu_custom_call.1} parent=5 // pred_check
        %p2103 = pneg %p2102
      $region62: #{tpu_custom_call.1} parent=5 // pred_check_branch
        %2105 = sbr.rel (%p2103) target = $region64
      $region63: #{tpu_custom_call.1} parent=5 // pred_region
        %s2106 = ssub.s32 %s18, 2
        // Predicated region
        $region65: #{tpu_custom_call.1} parent=63 // pred_check
          %p2107 = pneg %p220
        $region66: #{tpu_custom_call.1} parent=63 // pred_check_branch
          %2109 = sbr.rel (%p2107) target = $region68
        $region67: #{tpu_custom_call.1} parent=63 // pred_region
          %s2110 = sand.u32 %s205, 1
          %s2111 = scalar_lea.sflag [#allocation7], %s2110
          %s2112 = sand.u32 %s205, 1
          %s2113 = smul.addr %s2112, 12
          %s2114 = scalar_lea.vmem [#allocation8], %s2113
          %2115 = dma.done %s2111, 192
        $region68: #{tpu_custom_call.1} parent=63 // pred_fallthru
          _
      $region64: #{tpu_custom_call.1} parent=5 // pred_fallthru
        _
    $region6: #{tpu_custom_call.1} parent=1 // loop_footer
      %s22 = sadd.s32 1, %s18
    $region7: #{tpu_custom_call.1} parent=1 // loop_footer_branch
      %17 = sbr.rel target = $region3
    $region8: #{tpu_custom_call.1} parent=1 // loop_exit
      _
    %2116 = vsyncpa [#allocation6], 1
    %s2117 = scalar_lea.sflag [#allocation6], 1
    %2118 = vsyncpa %s2117, 1
    %2119 = vsyncpa [#allocation7], 1
    %s2120 = scalar_lea.sflag [#allocation7], 1
    %2121 = vsyncpa %s2120, 1

</llo_original>
